<compile_context>
chip_gen: v7x
topology: tpu7x:2x2x1
jax: 0.10.0
libtpu: 0.0.40
codegen_flags: <defaults>
</compile_context>

<pallas_src>
import functools

import jax
import jax.numpy as jnp
from jax.experimental import pallas as pl
from jax.experimental.pallas import tpu as pltpu


def gru_forward_kernel(x_ref, wih_ref, whh_ref, bih_ref, bhh_ref,
                       wdist_ref, bdist_ref, out_ref, *, T, B):
    """Whole GRU recurrence + output linear in a single kernel invocation.

    x_ref:     [T*B, E]   time-major, batch padded to a sublane multiple
    wih_ref:   [E, 3H]    whh_ref: [H, 3H]   (torch gate order r, z, n)
    bih_ref:   [1, 3H]    bhh_ref: [1, 3H]
    wdist_ref: [H, Lpad]  bdist_ref: [1, Lpad]   (lane-padded output linear)
    out_ref:   [B, Lpad]
    """
    H = whh_ref.shape[0]

    w_hh = whh_ref[...]
    b_hh = bhh_ref[...]

    # Hoisted input projection: one MXU matmul covering every time step.
    gi_all = (jnp.dot(x_ref[...], wih_ref[...], preferred_element_type=jnp.float32)
              + bih_ref[...])                                    # [T*B, 3H]

    # h0 = 0 (matches torch zero_state). Carried as a value -- no scratch needed.
    h = jnp.zeros((B, H), jnp.float32)

    # T is small and static -> fully unrolled loop with static, sublane-aligned slices.
    for t in range(T):
        gi = gi_all[t * B:(t + 1) * B, :]                        # [B, 3H]
        gh = jnp.dot(h, w_hh, preferred_element_type=jnp.float32) + b_hh
        r = jax.nn.sigmoid(gi[:, 0 * H:1 * H] + gh[:, 0 * H:1 * H])
        z = jax.nn.sigmoid(gi[:, 1 * H:2 * H] + gh[:, 1 * H:2 * H])
        n = jnp.tanh(gi[:, 2 * H:3 * H] + r * gh[:, 2 * H:3 * H])
        h = (1.0 - z) * n + z * h

    # Final linear ("dist") fused onto the last hidden state; lane-dense store.
    out_ref[...] = (jnp.dot(h, wdist_ref[...], preferred_element_type=jnp.float32)
                    + bdist_ref[...])


def rnn_forward(emb_table, notes, lengths, w_ih, w_hh, b_ih, b_hh, w_dist, b_dist):
    """Embedding lookup (plain JAX glue) + single-shot Pallas GRU + fused output linear."""
    del lengths  # unused by the torch forward as well
    B, T = notes.shape
    E = emb_table.shape[1]
    H = w_hh.shape[0]
    L = w_dist.shape[1]

    # Pad batch to a multiple of 8 sublanes (padded rows use token 0 -> zero embedding).
    B_pad = ((B + 7) // 8) * 8
    if B_pad != B:
        notes = jnp.pad(notes, ((0, B_pad - B), (0, 0)))

    # Pad logits lane dimension to a multiple of 128 for unmasked stores.
    L_pad = ((L + 127) // 128) * 128
    w_dist_p = jnp.pad(w_dist, ((0, 0), (0, L_pad - L)))
    b_dist_p = jnp.pad(b_dist, ((0, 0), (0, L_pad - L)))

    # Time-major flattened inputs [T*B_pad, E] without materializing/transposing [B,T,E].
    x_tm = jnp.take(emb_table, notes.T.reshape(-1), axis=0)      # [T*B_pad, E]

    vmem = pl.BlockSpec(memory_space=pltpu.MemorySpace.VMEM)
    out = pl.pallas_call(
        functools.partial(gru_forward_kernel, T=T, B=B_pad),
        out_shape=jax.ShapeDtypeStruct((B_pad, L_pad), jnp.float32),
        in_specs=[vmem] * 7,
        out_specs=vmem,
    )(x_tm, w_ih, w_hh, b_ih, b_hh, w_dist_p, b_dist_p)

    return out[:B, :L]


def reference_forward(emb_table, notes, w_ih, w_hh, b_ih, b_hh, w_dist, b_dist):
    """Pure-JAX reference (mirrors torch.nn.GRU math) for a correctness check."""
    x = jnp.take(emb_table, notes, axis=0)           # [B, T, E]
    B = x.shape[0]
    H = w_hh.shape[0]

    def step(h, xt):
        gi = xt @ w_ih + b_ih
        gh = h @ w_hh + b_hh
        r = jax.nn.sigmoid(gi[:, :H] + gh[:, :H])
        z = jax.nn.sigmoid(gi[:, H:2 * H] + gh[:, H:2 * H])
        n = jnp.tanh(gi[:, 2 * H:] + r * gh[:, 2 * H:])
        return (1.0 - z) * n + z * h, None

    h0 = jnp.zeros((B, H), jnp.float32)
    h_last, _ = jax.lax.scan(step, h0, jnp.transpose(x, (1, 0, 2)))
    return h_last @ w_dist + b_dist


if __name__ == "__main__":
    # config (synthetic, deterministic): rnn_type='gru'
    vocab_size = 100
    word_emb_size = 64               # E
    num_blocks = 2
    H = word_emb_size * num_blocks   # 128 -> lane-aligned gate slices
    label_space_size = 32
    B, T = 4, 8

    key = jax.random.PRNGKey(0)
    k_emb, k_wih, k_whh, k_bih, k_bhh, k_wd, k_bd, k_notes = jax.random.split(key, 8)

    # Parameter init (deterministic, PyTorch-like uniform(-1/sqrt(H), 1/sqrt(H)))
    emb_table = jax.random.normal(k_emb, (vocab_size, word_emb_size), jnp.float32) * 0.1
    emb_table = emb_table.at[0].set(0.0)             # padding_idx=0
    s = 1.0 / jnp.sqrt(float(H))
    w_ih = jax.random.uniform(k_wih, (word_emb_size, 3 * H), jnp.float32, -s, s)
    w_hh = jax.random.uniform(k_whh, (H, 3 * H), jnp.float32, -s, s)
    b_ih = jax.random.uniform(k_bih, (1, 3 * H), jnp.float32, -s, s)
    b_hh = jax.random.uniform(k_bhh, (1, 3 * H), jnp.float32, -s, s)
    w_dist = jax.random.uniform(k_wd, (H, label_space_size), jnp.float32, -s, s)
    b_dist = jax.random.uniform(k_bd, (1, label_space_size), jnp.float32, -s, s)

    notes = jax.random.randint(k_notes, (B, T), 0, vocab_size, dtype=jnp.int32)
    lengths = jnp.full((B,), T, dtype=jnp.int32)     # unused (matches torch forward)

    logits = rnn_forward(emb_table, notes, lengths,
                         w_ih, w_hh, b_ih, b_hh, w_dist, b_dist)
    logits = jax.block_until_ready(logits)

    ref = reference_forward(emb_table, notes, w_ih, w_hh, b_ih, b_hh, w_dist, b_dist)
    assert logits.shape == (B, label_space_size)
    assert jnp.allclose(logits, ref, atol=1e-4, rtol=1e-4), "mismatch vs JAX reference"

    print("KERNEL_OK")
</pallas_src>

<mosaic_0001>
module attributes {stable_mosaic.version = 11 : i64} {
  func.func @gru_forward_kernel(%arg0: memref<64x64xf32, #tpu.memory_space<vmem>>, %arg1: memref<64x384xf32, #tpu.memory_space<vmem>>, %arg2: memref<128x384xf32, #tpu.memory_space<vmem>>, %arg3: memref<1x384xf32, #tpu.memory_space<vmem>>, %arg4: memref<1x384xf32, #tpu.memory_space<vmem>>, %arg5: memref<128x128xf32, #tpu.memory_space<vmem>>, %arg6: memref<1x128xf32, #tpu.memory_space<vmem>>, %arg7: memref<8x128xf32, #tpu.memory_space<vmem>>) attributes {dimension_semantics = [], scalar_prefetch = 0 : i64, scratch_operands = 0 : i64, tpu.core_type = #tpu.core_type<tc>} {
    %c0 = arith.constant 0 : index
    %c0_0 = arith.constant 0 : index
    %0 = vector.load %arg2[%c0, %c0_0] : memref<128x384xf32, #tpu.memory_space<vmem>>, vector<128x384xf32>
    %c0_1 = arith.constant 0 : index
    %c0_2 = arith.constant 0 : index
    %1 = vector.load %arg4[%c0_1, %c0_2] : memref<1x384xf32, #tpu.memory_space<vmem>>, vector<1x384xf32>
    %c0_3 = arith.constant 0 : index
    %c0_4 = arith.constant 0 : index
    %2 = vector.load %arg0[%c0_3, %c0_4] : memref<64x64xf32, #tpu.memory_space<vmem>>, vector<64x64xf32>
    %c0_5 = arith.constant 0 : index
    %c0_6 = arith.constant 0 : index
    %3 = vector.load %arg1[%c0_5, %c0_6] : memref<64x384xf32, #tpu.memory_space<vmem>>, vector<64x384xf32>
    %cst = arith.constant dense<0.000000e+00> : vector<64x384xf32>
    %4 = tpu.matmul %2, %3, %cst {dimension_numbers = #tpu.dot_dimension_numbers<[1], [0], [0], [1], [0, 0, 1, 1], [], []>} : vector<64x64xf32>, vector<64x384xf32>, vector<64x384xf32> -> vector<64x384xf32>
    %c0_7 = arith.constant 0 : index
    %c0_8 = arith.constant 0 : index
    %5 = vector.load %arg3[%c0_7, %c0_8] : memref<1x384xf32, #tpu.memory_space<vmem>>, vector<1x384xf32>
    %6 = vector.broadcast %5 : vector<1x384xf32> to vector<64x384xf32>
    %7 = arith.addf %4, %6 : vector<64x384xf32>
    %cst_9 = arith.constant 0.000000e+00 : f32
    %8 = vector.broadcast %cst_9 : f32 to vector<8x128xf32>
    %9 = vector.extract_strided_slice %7 {offsets = [0, 0], sizes = [8, 384], strides = [1, 1]} : vector<64x384xf32> to vector<8x384xf32>
    %cst_10 = arith.constant dense<0.000000e+00> : vector<8x384xf32>
    %10 = tpu.matmul %8, %0, %cst_10 {dimension_numbers = #tpu.dot_dimension_numbers<[1], [0], [0], [1], [0, 0, 1, 1], [], []>} : vector<8x128xf32>, vector<128x384xf32>, vector<8x384xf32> -> vector<8x384xf32>
    %11 = vector.broadcast %1 : vector<1x384xf32> to vector<8x384xf32>
    %12 = arith.addf %10, %11 : vector<8x384xf32>
    %13 = vector.extract_strided_slice %9 {offsets = [0, 0], sizes = [8, 128], strides = [1, 1]} : vector<8x384xf32> to vector<8x128xf32>
    %14 = vector.extract_strided_slice %12 {offsets = [0, 0], sizes = [8, 128], strides = [1, 1]} : vector<8x384xf32> to vector<8x128xf32>
    %15 = arith.addf %13, %14 : vector<8x128xf32>
    %16 = arith.negf %15 : vector<8x128xf32>
    %17 = math.exp %16 : vector<8x128xf32>
    %cst_11 = arith.constant 1.000000e+00 : f32
    %18 = vector.broadcast %cst_11 : f32 to vector<8x128xf32>
    %19 = arith.addf %18, %17 : vector<8x128xf32>
    %20 = arith.divf %18, %19 : vector<8x128xf32>
    %21 = vector.extract_strided_slice %9 {offsets = [0, 128], sizes = [8, 128], strides = [1, 1]} : vector<8x384xf32> to vector<8x128xf32>
    %22 = vector.extract_strided_slice %12 {offsets = [0, 128], sizes = [8, 128], strides = [1, 1]} : vector<8x384xf32> to vector<8x128xf32>
    %23 = arith.addf %21, %22 : vector<8x128xf32>
    %24 = arith.negf %23 : vector<8x128xf32>
    %25 = math.exp %24 : vector<8x128xf32>
    %cst_12 = arith.constant 1.000000e+00 : f32
    %26 = vector.broadcast %cst_12 : f32 to vector<8x128xf32>
    %27 = arith.addf %26, %25 : vector<8x128xf32>
    %28 = arith.divf %26, %27 : vector<8x128xf32>
    %29 = vector.extract_strided_slice %9 {offsets = [0, 256], sizes = [8, 128], strides = [1, 1]} : vector<8x384xf32> to vector<8x128xf32>
    %30 = vector.extract_strided_slice %12 {offsets = [0, 256], sizes = [8, 128], strides = [1, 1]} : vector<8x384xf32> to vector<8x128xf32>
    %31 = arith.mulf %20, %30 : vector<8x128xf32>
    %32 = arith.addf %29, %31 : vector<8x128xf32>
    %33 = math.tanh %32 : vector<8x128xf32>
    %cst_13 = arith.constant 1.000000e+00 : f32
    %34 = vector.broadcast %cst_13 : f32 to vector<8x128xf32>
    %35 = arith.subf %34, %28 : vector<8x128xf32>
    %36 = arith.mulf %35, %33 : vector<8x128xf32>
    %37 = arith.mulf %28, %8 : vector<8x128xf32>
    %38 = arith.addf %36, %37 : vector<8x128xf32>
    %39 = vector.extract_strided_slice %7 {offsets = [8, 0], sizes = [8, 384], strides = [1, 1]} : vector<64x384xf32> to vector<8x384xf32>
    %cst_14 = arith.constant dense<0.000000e+00> : vector<8x384xf32>
    %40 = tpu.matmul %38, %0, %cst_14 {dimension_numbers = #tpu.dot_dimension_numbers<[1], [0], [0], [1], [0, 0, 1, 1], [], []>} : vector<8x128xf32>, vector<128x384xf32>, vector<8x384xf32> -> vector<8x384xf32>
    %41 = vector.broadcast %1 : vector<1x384xf32> to vector<8x384xf32>
    %42 = arith.addf %40, %41 : vector<8x384xf32>
    %43 = vector.extract_strided_slice %39 {offsets = [0, 0], sizes = [8, 128], strides = [1, 1]} : vector<8x384xf32> to vector<8x128xf32>
    %44 = vector.extract_strided_slice %42 {offsets = [0, 0], sizes = [8, 128], strides = [1, 1]} : vector<8x384xf32> to vector<8x128xf32>
    %45 = arith.addf %43, %44 : vector<8x128xf32>
    %46 = arith.negf %45 : vector<8x128xf32>
    %47 = math.exp %46 : vector<8x128xf32>
    %cst_15 = arith.constant 1.000000e+00 : f32
    %48 = vector.broadcast %cst_15 : f32 to vector<8x128xf32>
    %49 = arith.addf %48, %47 : vector<8x128xf32>
    %50 = arith.divf %48, %49 : vector<8x128xf32>
    %51 = vector.extract_strided_slice %39 {offsets = [0, 128], sizes = [8, 128], strides = [1, 1]} : vector<8x384xf32> to vector<8x128xf32>
    %52 = vector.extract_strided_slice %42 {offsets = [0, 128], sizes = [8, 128], strides = [1, 1]} : vector<8x384xf32> to vector<8x128xf32>
    %53 = arith.addf %51, %52 : vector<8x128xf32>
    %54 = arith.negf %53 : vector<8x128xf32>
    %55 = math.exp %54 : vector<8x128xf32>
    %cst_16 = arith.constant 1.000000e+00 : f32
    %56 = vector.broadcast %cst_16 : f32 to vector<8x128xf32>
    %57 = arith.addf %56, %55 : vector<8x128xf32>
    %58 = arith.divf %56, %57 : vector<8x128xf32>
    %59 = vector.extract_strided_slice %39 {offsets = [0, 256], sizes = [8, 128], strides = [1, 1]} : vector<8x384xf32> to vector<8x128xf32>
    %60 = vector.extract_strided_slice %42 {offsets = [0, 256], sizes = [8, 128], strides = [1, 1]} : vector<8x384xf32> to vector<8x128xf32>
    %61 = arith.mulf %50, %60 : vector<8x128xf32>
    %62 = arith.addf %59, %61 : vector<8x128xf32>
    %63 = math.tanh %62 : vector<8x128xf32>
    %cst_17 = arith.constant 1.000000e+00 : f32
    %64 = vector.broadcast %cst_17 : f32 to vector<8x128xf32>
    %65 = arith.subf %64, %58 : vector<8x128xf32>
    %66 = arith.mulf %65, %63 : vector<8x128xf32>
    %67 = arith.mulf %58, %38 : vector<8x128xf32>
    %68 = arith.addf %66, %67 : vector<8x128xf32>
    %69 = vector.extract_strided_slice %7 {offsets = [16, 0], sizes = [8, 384], strides = [1, 1]} : vector<64x384xf32> to vector<8x384xf32>
    %cst_18 = arith.constant dense<0.000000e+00> : vector<8x384xf32>
    %70 = tpu.matmul %68, %0, %cst_18 {dimension_numbers = #tpu.dot_dimension_numbers<[1], [0], [0], [1], [0, 0, 1, 1], [], []>} : vector<8x128xf32>, vector<128x384xf32>, vector<8x384xf32> -> vector<8x384xf32>
    %71 = vector.broadcast %1 : vector<1x384xf32> to vector<8x384xf32>
    %72 = arith.addf %70, %71 : vector<8x384xf32>
    %73 = vector.extract_strided_slice %69 {offsets = [0, 0], sizes = [8, 128], strides = [1, 1]} : vector<8x384xf32> to vector<8x128xf32>
    %74 = vector.extract_strided_slice %72 {offsets = [0, 0], sizes = [8, 128], strides = [1, 1]} : vector<8x384xf32> to vector<8x128xf32>
    %75 = arith.addf %73, %74 : vector<8x128xf32>
    %76 = arith.negf %75 : vector<8x128xf32>
    %77 = math.exp %76 : vector<8x128xf32>
    %cst_19 = arith.constant 1.000000e+00 : f32
    %78 = vector.broadcast %cst_19 : f32 to vector<8x128xf32>
    %79 = arith.addf %78, %77 : vector<8x128xf32>
    %80 = arith.divf %78, %79 : vector<8x128xf32>
    %81 = vector.extract_strided_slice %69 {offsets = [0, 128], sizes = [8, 128], strides = [1, 1]} : vector<8x384xf32> to vector<8x128xf32>
    %82 = vector.extract_strided_slice %72 {offsets = [0, 128], sizes = [8, 128], strides = [1, 1]} : vector<8x384xf32> to vector<8x128xf32>
    %83 = arith.addf %81, %82 : vector<8x128xf32>
    %84 = arith.negf %83 : vector<8x128xf32>
    %85 = math.exp %84 : vector<8x128xf32>
    %cst_20 = arith.constant 1.000000e+00 : f32
    %86 = vector.broadcast %cst_20 : f32 to vector<8x128xf32>
    %87 = arith.addf %86, %85 : vector<8x128xf32>
    %88 = arith.divf %86, %87 : vector<8x128xf32>
    %89 = vector.extract_strided_slice %69 {offsets = [0, 256], sizes = [8, 128], strides = [1, 1]} : vector<8x384xf32> to vector<8x128xf32>
    %90 = vector.extract_strided_slice %72 {offsets = [0, 256], sizes = [8, 128], strides = [1, 1]} : vector<8x384xf32> to vector<8x128xf32>
    %91 = arith.mulf %80, %90 : vector<8x128xf32>
    %92 = arith.addf %89, %91 : vector<8x128xf32>
    %93 = math.tanh %92 : vector<8x128xf32>
    %cst_21 = arith.constant 1.000000e+00 : f32
    %94 = vector.broadcast %cst_21 : f32 to vector<8x128xf32>
    %95 = arith.subf %94, %88 : vector<8x128xf32>
    %96 = arith.mulf %95, %93 : vector<8x128xf32>
    %97 = arith.mulf %88, %68 : vector<8x128xf32>
    %98 = arith.addf %96, %97 : vector<8x128xf32>
    %99 = vector.extract_strided_slice %7 {offsets = [24, 0], sizes = [8, 384], strides = [1, 1]} : vector<64x384xf32> to vector<8x384xf32>
    %cst_22 = arith.constant dense<0.000000e+00> : vector<8x384xf32>
    %100 = tpu.matmul %98, %0, %cst_22 {dimension_numbers = #tpu.dot_dimension_numbers<[1], [0], [0], [1], [0, 0, 1, 1], [], []>} : vector<8x128xf32>, vector<128x384xf32>, vector<8x384xf32> -> vector<8x384xf32>
    %101 = vector.broadcast %1 : vector<1x384xf32> to vector<8x384xf32>
    %102 = arith.addf %100, %101 : vector<8x384xf32>
    %103 = vector.extract_strided_slice %99 {offsets = [0, 0], sizes = [8, 128], strides = [1, 1]} : vector<8x384xf32> to vector<8x128xf32>
    %104 = vector.extract_strided_slice %102 {offsets = [0, 0], sizes = [8, 128], strides = [1, 1]} : vector<8x384xf32> to vector<8x128xf32>
    %105 = arith.addf %103, %104 : vector<8x128xf32>
    %106 = arith.negf %105 : vector<8x128xf32>
    %107 = math.exp %106 : vector<8x128xf32>
    %cst_23 = arith.constant 1.000000e+00 : f32
    %108 = vector.broadcast %cst_23 : f32 to vector<8x128xf32>
    %109 = arith.addf %108, %107 : vector<8x128xf32>
    %110 = arith.divf %108, %109 : vector<8x128xf32>
    %111 = vector.extract_strided_slice %99 {offsets = [0, 128], sizes = [8, 128], strides = [1, 1]} : vector<8x384xf32> to vector<8x128xf32>
    %112 = vector.extract_strided_slice %102 {offsets = [0, 128], sizes = [8, 128], strides = [1, 1]} : vector<8x384xf32> to vector<8x128xf32>
    %113 = arith.addf %111, %112 : vector<8x128xf32>
    %114 = arith.negf %113 : vector<8x128xf32>
    %115 = math.exp %114 : vector<8x128xf32>
    %cst_24 = arith.constant 1.000000e+00 : f32
    %116 = vector.broadcast %cst_24 : f32 to vector<8x128xf32>
    %117 = arith.addf %116, %115 : vector<8x128xf32>
    %118 = arith.divf %116, %117 : vector<8x128xf32>
    %119 = vector.extract_strided_slice %99 {offsets = [0, 256], sizes = [8, 128], strides = [1, 1]} : vector<8x384xf32> to vector<8x128xf32>
    %120 = vector.extract_strided_slice %102 {offsets = [0, 256], sizes = [8, 128], strides = [1, 1]} : vector<8x384xf32> to vector<8x128xf32>
    %121 = arith.mulf %110, %120 : vector<8x128xf32>
    %122 = arith.addf %119, %121 : vector<8x128xf32>
    %123 = math.tanh %122 : vector<8x128xf32>
    %cst_25 = arith.constant 1.000000e+00 : f32
    %124 = vector.broadcast %cst_25 : f32 to vector<8x128xf32>
    %125 = arith.subf %124, %118 : vector<8x128xf32>
    %126 = arith.mulf %125, %123 : vector<8x128xf32>
    %127 = arith.mulf %118, %98 : vector<8x128xf32>
    %128 = arith.addf %126, %127 : vector<8x128xf32>
    %129 = vector.extract_strided_slice %7 {offsets = [32, 0], sizes = [8, 384], strides = [1, 1]} : vector<64x384xf32> to vector<8x384xf32>
    %cst_26 = arith.constant dense<0.000000e+00> : vector<8x384xf32>
    %130 = tpu.matmul %128, %0, %cst_26 {dimension_numbers = #tpu.dot_dimension_numbers<[1], [0], [0], [1], [0, 0, 1, 1], [], []>} : vector<8x128xf32>, vector<128x384xf32>, vector<8x384xf32> -> vector<8x384xf32>
    %131 = vector.broadcast %1 : vector<1x384xf32> to vector<8x384xf32>
    %132 = arith.addf %130, %131 : vector<8x384xf32>
    %133 = vector.extract_strided_slice %129 {offsets = [0, 0], sizes = [8, 128], strides = [1, 1]} : vector<8x384xf32> to vector<8x128xf32>
    %134 = vector.extract_strided_slice %132 {offsets = [0, 0], sizes = [8, 128], strides = [1, 1]} : vector<8x384xf32> to vector<8x128xf32>
    %135 = arith.addf %133, %134 : vector<8x128xf32>
    %136 = arith.negf %135 : vector<8x128xf32>
    %137 = math.exp %136 : vector<8x128xf32>
    %cst_27 = arith.constant 1.000000e+00 : f32
    %138 = vector.broadcast %cst_27 : f32 to vector<8x128xf32>
    %139 = arith.addf %138, %137 : vector<8x128xf32>
    %140 = arith.divf %138, %139 : vector<8x128xf32>
    %141 = vector.extract_strided_slice %129 {offsets = [0, 128], sizes = [8, 128], strides = [1, 1]} : vector<8x384xf32> to vector<8x128xf32>
    %142 = vector.extract_strided_slice %132 {offsets = [0, 128], sizes = [8, 128], strides = [1, 1]} : vector<8x384xf32> to vector<8x128xf32>
    %143 = arith.addf %141, %142 : vector<8x128xf32>
    %144 = arith.negf %143 : vector<8x128xf32>
    %145 = math.exp %144 : vector<8x128xf32>
    %cst_28 = arith.constant 1.000000e+00 : f32
    %146 = vector.broadcast %cst_28 : f32 to vector<8x128xf32>
    %147 = arith.addf %146, %145 : vector<8x128xf32>
    %148 = arith.divf %146, %147 : vector<8x128xf32>
    %149 = vector.extract_strided_slice %129 {offsets = [0, 256], sizes = [8, 128], strides = [1, 1]} : vector<8x384xf32> to vector<8x128xf32>
    %150 = vector.extract_strided_slice %132 {offsets = [0, 256], sizes = [8, 128], strides = [1, 1]} : vector<8x384xf32> to vector<8x128xf32>
    %151 = arith.mulf %140, %150 : vector<8x128xf32>
    %152 = arith.addf %149, %151 : vector<8x128xf32>
    %153 = math.tanh %152 : vector<8x128xf32>
    %cst_29 = arith.constant 1.000000e+00 : f32
    %154 = vector.broadcast %cst_29 : f32 to vector<8x128xf32>
    %155 = arith.subf %154, %148 : vector<8x128xf32>
    %156 = arith.mulf %155, %153 : vector<8x128xf32>
    %157 = arith.mulf %148, %128 : vector<8x128xf32>
    %158 = arith.addf %156, %157 : vector<8x128xf32>
    %159 = vector.extract_strided_slice %7 {offsets = [40, 0], sizes = [8, 384], strides = [1, 1]} : vector<64x384xf32> to vector<8x384xf32>
    %cst_30 = arith.constant dense<0.000000e+00> : vector<8x384xf32>
    %160 = tpu.matmul %158, %0, %cst_30 {dimension_numbers = #tpu.dot_dimension_numbers<[1], [0], [0], [1], [0, 0, 1, 1], [], []>} : vector<8x128xf32>, vector<128x384xf32>, vector<8x384xf32> -> vector<8x384xf32>
    %161 = vector.broadcast %1 : vector<1x384xf32> to vector<8x384xf32>
    %162 = arith.addf %160, %161 : vector<8x384xf32>
    %163 = vector.extract_strided_slice %159 {offsets = [0, 0], sizes = [8, 128], strides = [1, 1]} : vector<8x384xf32> to vector<8x128xf32>
    %164 = vector.extract_strided_slice %162 {offsets = [0, 0], sizes = [8, 128], strides = [1, 1]} : vector<8x384xf32> to vector<8x128xf32>
    %165 = arith.addf %163, %164 : vector<8x128xf32>
    %166 = arith.negf %165 : vector<8x128xf32>
    %167 = math.exp %166 : vector<8x128xf32>
    %cst_31 = arith.constant 1.000000e+00 : f32
    %168 = vector.broadcast %cst_31 : f32 to vector<8x128xf32>
    %169 = arith.addf %168, %167 : vector<8x128xf32>
    %170 = arith.divf %168, %169 : vector<8x128xf32>
    %171 = vector.extract_strided_slice %159 {offsets = [0, 128], sizes = [8, 128], strides = [1, 1]} : vector<8x384xf32> to vector<8x128xf32>
    %172 = vector.extract_strided_slice %162 {offsets = [0, 128], sizes = [8, 128], strides = [1, 1]} : vector<8x384xf32> to vector<8x128xf32>
    %173 = arith.addf %171, %172 : vector<8x128xf32>
    %174 = arith.negf %173 : vector<8x128xf32>
    %175 = math.exp %174 : vector<8x128xf32>
    %cst_32 = arith.constant 1.000000e+00 : f32
    %176 = vector.broadcast %cst_32 : f32 to vector<8x128xf32>
    %177 = arith.addf %176, %175 : vector<8x128xf32>
    %178 = arith.divf %176, %177 : vector<8x128xf32>
    %179 = vector.extract_strided_slice %159 {offsets = [0, 256], sizes = [8, 128], strides = [1, 1]} : vector<8x384xf32> to vector<8x128xf32>
    %180 = vector.extract_strided_slice %162 {offsets = [0, 256], sizes = [8, 128], strides = [1, 1]} : vector<8x384xf32> to vector<8x128xf32>
    %181 = arith.mulf %170, %180 : vector<8x128xf32>
    %182 = arith.addf %179, %181 : vector<8x128xf32>
    %183 = math.tanh %182 : vector<8x128xf32>
    %cst_33 = arith.constant 1.000000e+00 : f32
    %184 = vector.broadcast %cst_33 : f32 to vector<8x128xf32>
    %185 = arith.subf %184, %178 : vector<8x128xf32>
    %186 = arith.mulf %185, %183 : vector<8x128xf32>
    %187 = arith.mulf %178, %158 : vector<8x128xf32>
    %188 = arith.addf %186, %187 : vector<8x128xf32>
    %189 = vector.extract_strided_slice %7 {offsets = [48, 0], sizes = [8, 384], strides = [1, 1]} : vector<64x384xf32> to vector<8x384xf32>
    %cst_34 = arith.constant dense<0.000000e+00> : vector<8x384xf32>
    %190 = tpu.matmul %188, %0, %cst_34 {dimension_numbers = #tpu.dot_dimension_numbers<[1], [0], [0], [1], [0, 0, 1, 1], [], []>} : vector<8x128xf32>, vector<128x384xf32>, vector<8x384xf32> -> vector<8x384xf32>
    %191 = vector.broadcast %1 : vector<1x384xf32> to vector<8x384xf32>
    %192 = arith.addf %190, %191 : vector<8x384xf32>
    %193 = vector.extract_strided_slice %189 {offsets = [0, 0], sizes = [8, 128], strides = [1, 1]} : vector<8x384xf32> to vector<8x128xf32>
    %194 = vector.extract_strided_slice %192 {offsets = [0, 0], sizes = [8, 128], strides = [1, 1]} : vector<8x384xf32> to vector<8x128xf32>
    %195 = arith.addf %193, %194 : vector<8x128xf32>
    %196 = arith.negf %195 : vector<8x128xf32>
    %197 = math.exp %196 : vector<8x128xf32>
    %cst_35 = arith.constant 1.000000e+00 : f32
    %198 = vector.broadcast %cst_35 : f32 to vector<8x128xf32>
    %199 = arith.addf %198, %197 : vector<8x128xf32>
    %200 = arith.divf %198, %199 : vector<8x128xf32>
    %201 = vector.extract_strided_slice %189 {offsets = [0, 128], sizes = [8, 128], strides = [1, 1]} : vector<8x384xf32> to vector<8x128xf32>
    %202 = vector.extract_strided_slice %192 {offsets = [0, 128], sizes = [8, 128], strides = [1, 1]} : vector<8x384xf32> to vector<8x128xf32>
    %203 = arith.addf %201, %202 : vector<8x128xf32>
    %204 = arith.negf %203 : vector<8x128xf32>
    %205 = math.exp %204 : vector<8x128xf32>
    %cst_36 = arith.constant 1.000000e+00 : f32
    %206 = vector.broadcast %cst_36 : f32 to vector<8x128xf32>
    %207 = arith.addf %206, %205 : vector<8x128xf32>
    %208 = arith.divf %206, %207 : vector<8x128xf32>
    %209 = vector.extract_strided_slice %189 {offsets = [0, 256], sizes = [8, 128], strides = [1, 1]} : vector<8x384xf32> to vector<8x128xf32>
    %210 = vector.extract_strided_slice %192 {offsets = [0, 256], sizes = [8, 128], strides = [1, 1]} : vector<8x384xf32> to vector<8x128xf32>
    %211 = arith.mulf %200, %210 : vector<8x128xf32>
    %212 = arith.addf %209, %211 : vector<8x128xf32>
    %213 = math.tanh %212 : vector<8x128xf32>
    %cst_37 = arith.constant 1.000000e+00 : f32
    %214 = vector.broadcast %cst_37 : f32 to vector<8x128xf32>
    %215 = arith.subf %214, %208 : vector<8x128xf32>
    %216 = arith.mulf %215, %213 : vector<8x128xf32>
    %217 = arith.mulf %208, %188 : vector<8x128xf32>
    %218 = arith.addf %216, %217 : vector<8x128xf32>
    %219 = vector.extract_strided_slice %7 {offsets = [56, 0], sizes = [8, 384], strides = [1, 1]} : vector<64x384xf32> to vector<8x384xf32>
    %cst_38 = arith.constant dense<0.000000e+00> : vector<8x384xf32>
    %220 = tpu.matmul %218, %0, %cst_38 {dimension_numbers = #tpu.dot_dimension_numbers<[1], [0], [0], [1], [0, 0, 1, 1], [], []>} : vector<8x128xf32>, vector<128x384xf32>, vector<8x384xf32> -> vector<8x384xf32>
    %221 = vector.broadcast %1 : vector<1x384xf32> to vector<8x384xf32>
    %222 = arith.addf %220, %221 : vector<8x384xf32>
    %223 = vector.extract_strided_slice %219 {offsets = [0, 0], sizes = [8, 128], strides = [1, 1]} : vector<8x384xf32> to vector<8x128xf32>
    %224 = vector.extract_strided_slice %222 {offsets = [0, 0], sizes = [8, 128], strides = [1, 1]} : vector<8x384xf32> to vector<8x128xf32>
    %225 = arith.addf %223, %224 : vector<8x128xf32>
    %226 = arith.negf %225 : vector<8x128xf32>
    %227 = math.exp %226 : vector<8x128xf32>
    %cst_39 = arith.constant 1.000000e+00 : f32
    %228 = vector.broadcast %cst_39 : f32 to vector<8x128xf32>
    %229 = arith.addf %228, %227 : vector<8x128xf32>
    %230 = arith.divf %228, %229 : vector<8x128xf32>
    %231 = vector.extract_strided_slice %219 {offsets = [0, 128], sizes = [8, 128], strides = [1, 1]} : vector<8x384xf32> to vector<8x128xf32>
    %232 = vector.extract_strided_slice %222 {offsets = [0, 128], sizes = [8, 128], strides = [1, 1]} : vector<8x384xf32> to vector<8x128xf32>
    %233 = arith.addf %231, %232 : vector<8x128xf32>
    %234 = arith.negf %233 : vector<8x128xf32>
    %235 = math.exp %234 : vector<8x128xf32>
    %cst_40 = arith.constant 1.000000e+00 : f32
    %236 = vector.broadcast %cst_40 : f32 to vector<8x128xf32>
    %237 = arith.addf %236, %235 : vector<8x128xf32>
    %238 = arith.divf %236, %237 : vector<8x128xf32>
    %239 = vector.extract_strided_slice %219 {offsets = [0, 256], sizes = [8, 128], strides = [1, 1]} : vector<8x384xf32> to vector<8x128xf32>
    %240 = vector.extract_strided_slice %222 {offsets = [0, 256], sizes = [8, 128], strides = [1, 1]} : vector<8x384xf32> to vector<8x128xf32>
    %241 = arith.mulf %230, %240 : vector<8x128xf32>
    %242 = arith.addf %239, %241 : vector<8x128xf32>
    %243 = math.tanh %242 : vector<8x128xf32>
    %cst_41 = arith.constant 1.000000e+00 : f32
    %244 = vector.broadcast %cst_41 : f32 to vector<8x128xf32>
    %245 = arith.subf %244, %238 : vector<8x128xf32>
    %246 = arith.mulf %245, %243 : vector<8x128xf32>
    %247 = arith.mulf %238, %218 : vector<8x128xf32>
    %248 = arith.addf %246, %247 : vector<8x128xf32>
    %c0_42 = arith.constant 0 : index
    %c0_43 = arith.constant 0 : index
    %249 = vector.load %arg5[%c0_42, %c0_43] : memref<128x128xf32, #tpu.memory_space<vmem>>, vector<128x128xf32>
    %cst_44 = arith.constant dense<0.000000e+00> : vector<8x128xf32>
    %250 = tpu.matmul %248, %249, %cst_44 {dimension_numbers = #tpu.dot_dimension_numbers<[1], [0], [0], [1], [0, 0, 1, 1], [], []>} : vector<8x128xf32>, vector<128x128xf32>, vector<8x128xf32> -> vector<8x128xf32>
    %c0_45 = arith.constant 0 : index
    %c0_46 = arith.constant 0 : index
    %251 = vector.load %arg6[%c0_45, %c0_46] : memref<1x128xf32, #tpu.memory_space<vmem>>, vector<1x128xf32>
    %252 = vector.broadcast %251 : vector<1x128xf32> to vector<8x128xf32>
    %253 = arith.addf %250, %252 : vector<8x128xf32>
    %c0_47 = arith.constant 0 : index
    %c0_48 = arith.constant 0 : index
    %254 = vector.load %arg7[%c0_47, %c0_48] : memref<8x128xf32, #tpu.memory_space<vmem>>, vector<8x128xf32>
    tpu.vector_store %arg7[%c0_47, %c0_48], %253 {strides = array<i32>} : memref<8x128xf32, #tpu.memory_space<vmem>>, vector<8x128xf32>,
    return
  }
}

</mosaic_0001>

<llo_original>
// kernel: tpu_custom_call.1
$region0: #{tpu_custom_call.1}
  #allocation0 [shape = 'u32[]', space=smem, size = 0x4, offset = 0x4, fixed_abs, tag = 'smem constant byte address 0x4 - core index']
  #allocation1 [shape = 'u32[144,128]{1,0:T(1,128)}', space=vmem, size = 0x12000, scoped, tag = 'internal scratch']
  %s0 = inlined_call_operand.hbm [shape: f32[64,64], index: 0, kind: input, shape index: {}]
  %s1 = inlined_call_operand.hbm [shape: f32[64,384], index: 1, kind: input, shape index: {}]
  %s2 = inlined_call_operand.hbm [shape: f32[128,384], index: 2, kind: input, shape index: {}]
  %s3 = inlined_call_operand.vmem [shape: f32[1,384], index: 3, kind: input, shape index: {}]
  %s4 = inlined_call_operand.vmem [shape: f32[1,384], index: 4, kind: input, shape index: {}]
  %s5 = inlined_call_operand.hbm [shape: f32[128,128], index: 5, kind: input, shape index: {}]
  %s6 = inlined_call_operand.vmem [shape: f32[1,128], index: 6, kind: input, shape index: {}]
  %s7 = inlined_call_operand.hbm [shape: f32[8,128], index: 7, kind: output, shape index: {}]
  %s8 = sld [smem:[#allocation0]]
  $region54: #{tpu_custom_call.1} parent=0
    _
  %s10 = ssub.s32 1, %s8
  %s11 = scalar_select 0, %s10, %s8
  $region1: #{tpu_custom_call.1} parent=0
    #allocation2 [shape = 'u8[32768]{0}', space=vmem, size = 0x8000, scoped, tag = 'input window, operand 0, single buffered']
    #allocation3 [shape = 's32[1]{0}', space=sflag, size = 0x4, scoped, tag = 'scoped memory for tpu_custom_call.1']
    #allocation4 [shape = 's32[1]{0}', space=sflag, size = 0x4, scoped, tag = 'scoped memory for tpu_custom_call.1']
    #allocation5 [shape = 'u8[98304]{0}', space=vmem, size = 0x18000, scoped, tag = 'input window, operand 1, single buffered']
    #allocation6 [shape = 's32[1]{0}', space=sflag, size = 0x4, scoped, tag = 'scoped memory for tpu_custom_call.1']
    #allocation7 [shape = 'u8[196608]{0}', space=vmem, size = 0x30000, scoped, tag = 'input window, operand 2, single buffered']
    #allocation8 [shape = 'u8[65536]{0}', space=vmem, size = 0x10000, scoped, tag = 'input window, operand 5, single buffered']
    #allocation9 [shape = 's32[1]{0}', space=sflag, size = 0x4, scoped, tag = 'scoped memory for tpu_custom_call.1']
    #allocation10 [shape = 'u8[4096]{0}', space=vmem, size = 0x1000, scoped, tag = 'output window, operand 0, single buffered']
    %12 = vsyncpa [#allocation3], 0
    %13 = vsyncpa [#allocation6], 0
    %14 = vsyncpa [#allocation9], 0
    %15 = vsyncpa [#allocation4], 0
    // Predicated region
    $region2: #{tpu_custom_call.1} parent=1 // pred_check
      _
    $region3: #{tpu_custom_call.1} parent=1 // pred_check_branch
      %17 = sbr.rel (0) target = $region5
    $region4: #{tpu_custom_call.1} parent=1 // pred_region
      %s19 = ssub.s32 1024, 1024
      %20 = vsyncadd [#allocation3], %s19
      %s21 = sshll.u32 [#allocation2], 4
      %s22 = int_to_ptr.vmem [resolvable:$true] %s21
      %27 = dma.hbm_to_vmem [thread:$0]  %s0, 1024, %s22, [#allocation3], 128, 128, 8
    $region5: #{tpu_custom_call.1} parent=1 // pred_fallthru
      _
    // Predicated region
    $region6: #{tpu_custom_call.1} parent=1 // pred_check
      _
    $region7: #{tpu_custom_call.1} parent=1 // pred_check_branch
      %29 = sbr.rel (0) target = $region9
    $region8: #{tpu_custom_call.1} parent=1 // pred_region
      %s31 = ssub.s32 3072, 3072
      %32 = vsyncadd [#allocation6], %s31
      %s33 = sshll.u32 [#allocation5], 4
      %s34 = int_to_ptr.vmem [resolvable:$true] %s33
      %39 = dma.hbm_to_vmem [thread:$0]  %s1, 3072, %s34, [#allocation6], 384, 384, 24
    $region9: #{tpu_custom_call.1} parent=1 // pred_fallthru
      _
    // Predicated region
    $region10: #{tpu_custom_call.1} parent=1 // pred_check
      _
    $region11: #{tpu_custom_call.1} parent=1 // pred_check_branch
      %41 = sbr.rel (0) target = $region13
    $region12: #{tpu_custom_call.1} parent=1 // pred_region
      %s43 = ssub.s32 6144, 6144
      %44 = vsyncadd [#allocation6], %s43
      %s45 = sshll.u32 [#allocation7], 4
      %s46 = int_to_ptr.vmem [resolvable:$true] %s45
      %51 = dma.hbm_to_vmem [thread:$0]  %s2, 6144, %s46, [#allocation6], 384, 384, 24
    $region13: #{tpu_custom_call.1} parent=1 // pred_fallthru
      _
    // Predicated region
    $region14: #{tpu_custom_call.1} parent=1 // pred_check
      _
    $region15: #{tpu_custom_call.1} parent=1 // pred_check_branch
      %53 = sbr.rel (0) target = $region17
    $region16: #{tpu_custom_call.1} parent=1 // pred_region
      _
    $region17: #{tpu_custom_call.1} parent=1 // pred_fallthru
      _
    // Predicated region
    $region18: #{tpu_custom_call.1} parent=1 // pred_check
      _
    $region19: #{tpu_custom_call.1} parent=1 // pred_check_branch
      %55 = sbr.rel (0) target = $region21
    $region20: #{tpu_custom_call.1} parent=1 // pred_region
      _
    $region21: #{tpu_custom_call.1} parent=1 // pred_fallthru
      _
    // Predicated region
    $region22: #{tpu_custom_call.1} parent=1 // pred_check
      _
    $region23: #{tpu_custom_call.1} parent=1 // pred_check_branch
      %57 = sbr.rel (0) target = $region25
    $region24: #{tpu_custom_call.1} parent=1 // pred_region
      %s59 = ssub.s32 2048, 2048
      %60 = vsyncadd [#allocation9], %s59
      %s61 = sshll.u32 [#allocation8], 4
      %s62 = int_to_ptr.vmem [resolvable:$true] %s61
      %67 = dma.hbm_to_vmem [thread:$0]  %s5, 2048, %s62, [#allocation9], 128, 128, 8
    $region25: #{tpu_custom_call.1} parent=1 // pred_fallthru
      _
    // Predicated region
    $region26: #{tpu_custom_call.1} parent=1 // pred_check
      _
    $region27: #{tpu_custom_call.1} parent=1 // pred_check_branch
      %69 = sbr.rel (0) target = $region29
    $region28: #{tpu_custom_call.1} parent=1 // pred_region
      _
    $region29: #{tpu_custom_call.1} parent=1 // pred_fallthru
      _
    // Predicated region
    $region30: #{tpu_custom_call.1} parent=1 // pred_check
      _
    $region31: #{tpu_custom_call.1} parent=1 // pred_check_branch
      %71 = sbr.rel (0) target = $region33
    $region32: #{tpu_custom_call.1} parent=1 // pred_region
      %72 = dma.done [#allocation3], 1024
    $region33: #{tpu_custom_call.1} parent=1 // pred_fallthru
      _
    // Predicated region
    $region34: #{tpu_custom_call.1} parent=1 // pred_check
      _
    $region35: #{tpu_custom_call.1} parent=1 // pred_check_branch
      %74 = sbr.rel (0) target = $region37
    $region36: #{tpu_custom_call.1} parent=1 // pred_region
      %75 = dma.done [#allocation6], 3072
    $region37: #{tpu_custom_call.1} parent=1 // pred_fallthru
      _
    // Predicated region
    $region38: #{tpu_custom_call.1} parent=1 // pred_check
      _
    $region39: #{tpu_custom_call.1} parent=1 // pred_check_branch
      %77 = sbr.rel (0) target = $region41
    $region40: #{tpu_custom_call.1} parent=1 // pred_region
      %78 = dma.done [#allocation6], 6144
    $region41: #{tpu_custom_call.1} parent=1 // pred_fallthru
      _
    // Predicated region
    $region42: #{tpu_custom_call.1} parent=1 // pred_check
      _
    $region43: #{tpu_custom_call.1} parent=1 // pred_check_branch
      %80 = sbr.rel (0) target = $region45
    $region44: #{tpu_custom_call.1} parent=1 // pred_region
      %81 = dma.done [#allocation9], 2048
    $region45: #{tpu_custom_call.1} parent=1 // pred_fallthru
      _
    %v82 = vld [vmem:[#allocation7] sm:$0xff]
    %v83 = vld [vmem:[#allocation7 + $0x8] sm:$0xff]
    %v84 = vld [vmem:[#allocation7 + $0x10] sm:$0xff]
    %v85 = vld [vmem:[#allocation7 + $0x18] sm:$0xff]
    %v86 = vld [vmem:[#allocation7 + $0x20] sm:$0xff]
    %v87 = vld [vmem:[#allocation7 + $0x28] sm:$0xff]
    %v88 = vld [vmem:[#allocation7 + $0x30] sm:$0xff]
    %v89 = vld [vmem:[#allocation7 + $0x38] sm:$0xff]
    %v90 = vld [vmem:[#allocation7 + $0x40] sm:$0xff]
    %v91 = vld [vmem:[#allocation7 + $0x48] sm:$0xff]
    %v92 = vld [vmem:[#allocation7 + $0x50] sm:$0xff]
    %v93 = vld [vmem:[#allocation7 + $0x58] sm:$0xff]
    %v94 = vld [vmem:[#allocation7 + $0x60] sm:$0xff]
    %v95 = vld [vmem:[#allocation7 + $0x68] sm:$0xff]
    %v96 = vld [vmem:[#allocation7 + $0x70] sm:$0xff]
    %v97 = vld [vmem:[#allocation7 + $0x78] sm:$0xff]
    %v98 = vld [vmem:[#allocation7 + $0x80] sm:$0xff]
    %v99 = vld [vmem:[#allocation7 + $0x88] sm:$0xff]
    %v100 = vld [vmem:[#allocation7 + $0x90] sm:$0xff]
    %v101 = vld [vmem:[#allocation7 + $0x98] sm:$0xff]
    %v102 = vld [vmem:[#allocation7 + $0xa0] sm:$0xff]
    %v103 = vld [vmem:[#allocation7 + $0xa8] sm:$0xff]
    %v104 = vld [vmem:[#allocation7 + $0xb0] sm:$0xff]
    %v105 = vld [vmem:[#allocation7 + $0xb8] sm:$0xff]
    %v106 = vld [vmem:[#allocation7 + $0xc0] sm:$0xff]
    %v107 = vld [vmem:[#allocation7 + $0xc8] sm:$0xff]
    %v108 = vld [vmem:[#allocation7 + $0xd0] sm:$0xff]
    %v109 = vld [vmem:[#allocation7 + $0xd8] sm:$0xff]
    %v110 = vld [vmem:[#allocation7 + $0xe0] sm:$0xff]
    %v111 = vld [vmem:[#allocation7 + $0xe8] sm:$0xff]
    %v112 = vld [vmem:[#allocation7 + $0xf0] sm:$0xff]
    %v113 = vld [vmem:[#allocation7 + $0xf8] sm:$0xff]
    %v114 = vld [vmem:[#allocation7 + $0x100] sm:$0xff]
    %v115 = vld [vmem:[#allocation7 + $0x108] sm:$0xff]
    %v116 = vld [vmem:[#allocation7 + $0x110] sm:$0xff]
    %v117 = vld [vmem:[#allocation7 + $0x118] sm:$0xff]
    %v118 = vld [vmem:[#allocation7 + $0x120] sm:$0xff]
    %v119 = vld [vmem:[#allocation7 + $0x128] sm:$0xff]
    %v120 = vld [vmem:[#allocation7 + $0x130] sm:$0xff]
    %v121 = vld [vmem:[#allocation7 + $0x138] sm:$0xff]
    %v122 = vld [vmem:[#allocation7 + $0x140] sm:$0xff]
    %v123 = vld [vmem:[#allocation7 + $0x148] sm:$0xff]
    %v124 = vld [vmem:[#allocation7 + $0x150] sm:$0xff]
    %v125 = vld [vmem:[#allocation7 + $0x158] sm:$0xff]
    %v126 = vld [vmem:[#allocation7 + $0x160] sm:$0xff]
    %v127 = vld [vmem:[#allocation7 + $0x168] sm:$0xff]
    %v128 = vld [vmem:[#allocation7 + $0x170] sm:$0xff]
    %v129 = vld [vmem:[#allocation7 + $0x178] sm:$0xff]
    %v130 = vld [vmem:[%s4] sm:$0x7]
    %v131 = vld [vmem:[#allocation2] sm:$0xff]
    %v132 = vld [vmem:[#allocation2 + $0x8] sm:$0xff]
    %v133 = vld [vmem:[#allocation2 + $0x10] sm:$0xff]
    %v134 = vld [vmem:[#allocation2 + $0x18] sm:$0xff]
    %v135 = vld [vmem:[#allocation2 + $0x20] sm:$0xff]
    %v136 = vld [vmem:[#allocation2 + $0x28] sm:$0xff]
    %v137 = vld [vmem:[#allocation2 + $0x30] sm:$0xff]
    %v138 = vld [vmem:[#allocation2 + $0x38] sm:$0xff]
    %v139 = vld [vmem:[#allocation5] sm:$0xff]
    %v140 = vld [vmem:[#allocation5 + $0x8] sm:$0xff]
    %v141 = vld [vmem:[#allocation5 + $0x10] sm:$0xff]
    %v142 = vld [vmem:[#allocation5 + $0x18] sm:$0xff]
    %v143 = vld [vmem:[#allocation5 + $0x20] sm:$0xff]
    %v144 = vld [vmem:[#allocation5 + $0x28] sm:$0xff]
    %v145 = vld [vmem:[#allocation5 + $0x30] sm:$0xff]
    %v146 = vld [vmem:[#allocation5 + $0x38] sm:$0xff]
    %v147 = vld [vmem:[#allocation5 + $0x40] sm:$0xff]
    %v148 = vld [vmem:[#allocation5 + $0x48] sm:$0xff]
    %v149 = vld [vmem:[#allocation5 + $0x50] sm:$0xff]
    %v150 = vld [vmem:[#allocation5 + $0x58] sm:$0xff]
    %v151 = vld [vmem:[#allocation5 + $0x60] sm:$0xff]
    %v152 = vld [vmem:[#allocation5 + $0x68] sm:$0xff]
    %v153 = vld [vmem:[#allocation5 + $0x70] sm:$0xff]
    %v154 = vld [vmem:[#allocation5 + $0x78] sm:$0xff]
    %v155 = vld [vmem:[#allocation5 + $0x80] sm:$0xff]
    %v156 = vld [vmem:[#allocation5 + $0x88] sm:$0xff]
    %v157 = vld [vmem:[#allocation5 + $0x90] sm:$0xff]
    %v158 = vld [vmem:[#allocation5 + $0x98] sm:$0xff]
    %v159 = vld [vmem:[#allocation5 + $0xa0] sm:$0xff]
    %v160 = vld [vmem:[#allocation5 + $0xa8] sm:$0xff]
    %v161 = vld [vmem:[#allocation5 + $0xb0] sm:$0xff]
    %v162 = vld [vmem:[#allocation5 + $0xb8] sm:$0xff]
    %v163 = vld [vmem:[%s3] sm:$0x7]
    %v165 = vlaneseq
    %v166 = vshrl.u32 %v165, 7
    %v167 = vsub.s32 0, %v166
    %v168 = vrot.slane %v163, %v167
    %v169 = vlaneseq
    %v170 = vshrl.u32 %v169, 7
    %v171 = vsub.s32 1, %v170
    %v172 = vrot.slane %v163, %v171
    %v173 = vlaneseq
    %v174 = vshrl.u32 %v173, 7
    %v175 = vsub.s32 2, %v174
    %v176 = vrot.slane %v163, %v175
    %vm180 = vcmask 523264
    %v182 = vsel %vm180, %v131, 0
    %v185 = vsel %vm180, %v132, 0
    %v188 = vsel %vm180, %v133, 0
    %v191 = vsel %vm180, %v134, 0
    %v194 = vsel %vm180, %v135, 0
    %v197 = vsel %vm180, %v136, 0
    %v200 = vsel %vm180, %v137, 0
    %v203 = vsel %vm180, %v138, 0
    %205 = vmatprep.subr.mxu0 %v140
    %206 = vmatpush1.msra.mxu0 %v139
    %207 = vmatprep.subr.mxu0 %v143
    %208 = vmatpush1.msra.mxu0 %v142
    %209 = vmatprep.subr.mxu0 %v146
    %210 = vmatpush1.msra.mxu0 %v145
    %211 = vmatprep.subr.mxu0 %v149
    %212 = vmatpush1.msra.mxu0 %v148
    %213 = vmatprep.subr.mxu0 %v152
    %214 = vmatpush1.msra.mxu0 %v151
    %215 = vmatprep.subr.mxu0 %v155
    %216 = vmatpush1.msra.mxu0 %v154
    %217 = vmatprep.subr.mxu0 %v158
    %218 = vmatpush1.msra.mxu0 %v157
    %219 = vmatprep.subr.mxu0 %v161
    %220 = vmatpush1.msra.mxu0 %v160
    %221 = vmatprep.subr.mxu0 0.0
    %222 = vmatpush1.msra.mxu0 0.0
    %223 = vmatprep.subr.mxu0 0.0
    %224 = vmatpush1.msra.mxu0 0.0
    %225 = vmatprep.subr.mxu0 0.0
    %226 = vmatpush1.msra.mxu0 0.0
    %227 = vmatprep.subr.mxu0 0.0
    %228 = vmatpush1.msra.mxu0 0.0
    %229 = vmatprep.subr.mxu0 0.0
    %230 = vmatpush1.msra.mxu0 0.0
    %231 = vmatprep.subr.mxu0 0.0
    %232 = vmatpush1.msra.mxu0 0.0
    %233 = vmatprep.subr.mxu0 0.0
    %234 = vmatpush1.msra.mxu0 0.0
    %235 = vmatprep.subr.mxu0 0.0
    %236 = vmatpush1.msra.mxu0 0.0
    %237 = vmatprep.subr.mxu0 0.0
    %238 = vmatpush1.msra.mxu0 0.0
    %239 = vmatprep.subr.mxu0 0.0
    %240 = vmatpush1.msra.mxu0 0.0
    %241 = vmatprep.subr.mxu0 0.0
    %242 = vmatpush1.msra.mxu0 0.0
    %243 = vmatprep.subr.mxu0 0.0
    %244 = vmatpush1.msra.mxu0 0.0
    %245 = vmatprep.subr.mxu0 0.0
    %246 = vmatpush1.msra.mxu0 0.0
    %247 = vmatprep.subr.mxu0 0.0
    %248 = vmatpush1.msra.mxu0 0.0
    %249 = vmatprep.subr.mxu0 0.0
    %250 = vmatpush1.msra.mxu0 0.0
    %251 = vmatprep.subr.mxu0 0.0
    %252 = vmatpush1.msra.mxu0 0.0
    %253 = vmatprep.subr.mxu0 0.0
    %254 = vmatpush1.msra.mxu0 0.0
    %255 = vmatprep.subr.mxu0 0.0
    %256 = vmatpush1.msra.mxu0 0.0
    %257 = vmatprep.subr.mxu0 0.0
    %258 = vmatpush1.msra.mxu0 0.0
    %259 = vmatprep.subr.mxu0 0.0
    %260 = vmatpush1.msra.mxu0 0.0
    %261 = vmatprep.subr.mxu0 0.0
    %262 = vmatpush1.msra.mxu0 0.0
    %263 = vmatprep.subr.mxu0 0.0
    %264 = vmatpush1.msra.mxu0 0.0
    %265 = vmatprep.subr.mxu0 0.0
    %266 = vmatpush1.msra.mxu0 0.0
    %267 = vmatprep.subr.mxu0 0.0
    %268 = vmatpush1.msra.mxu0 0.0
    %269 = vmatprep.mubr.f32.mxu0 0.0
    %270 = vmatmul.mubr.f32.gmra.mrb[0].mxu0 %v182
    %v271 = vpop.f32.mrb[0].mxu0
    %v272 = vadd.f32 %v168, %v271
    %v273 = vpop.f32.mrb[0].mxu0
    %v274 = vadd.f32 %v172, %v273
    %275 = vmatprep.mubr.f32.mxu0 0.0
    %276 = vmatmul.mubr.f32.gmra.mrb[0].mxu0 %v185
    %v277 = vpop.f32.mrb[0].mxu0
    %v278 = vadd.f32 %v168, %v277
    %v279 = vpop.f32.mrb[0].mxu0
    %v280 = vadd.f32 %v172, %v279
    %281 = vmatprep.mubr.f32.mxu0 0.0
    %282 = vmatmul.mubr.f32.gmra.mrb[0].mxu0 %v188
    %v283 = vpop.f32.mrb[0].mxu0
    %v284 = vadd.f32 %v168, %v283
    %v285 = vpop.f32.mrb[0].mxu0
    %v286 = vadd.f32 %v172, %v285
    %287 = vmatprep.mubr.f32.mxu0 0.0
    %288 = vmatmul.mubr.f32.gmra.mrb[0].mxu0 %v191
    %v289 = vpop.f32.mrb[0].mxu0
    %v290 = vadd.f32 %v168, %v289
    %v291 = vpop.f32.mrb[0].mxu0
    %v292 = vadd.f32 %v172, %v291
    %293 = vmatprep.mubr.f32.mxu0 0.0
    %294 = vmatmul.mubr.f32.gmra.mrb[0].mxu0 %v194
    %v295 = vpop.f32.mrb[0].mxu0
    %v296 = vadd.f32 %v168, %v295
    %v297 = vpop.f32.mrb[0].mxu0
    %v298 = vadd.f32 %v172, %v297
    %299 = vmatprep.mubr.f32.mxu0 0.0
    %300 = vmatmul.mubr.f32.gmra.mrb[0].mxu0 %v197
    %v301 = vpop.f32.mrb[0].mxu0
    %v302 = vadd.f32 %v168, %v301
    %v303 = vpop.f32.mrb[0].mxu0
    %v304 = vadd.f32 %v172, %v303
    %305 = vmatprep.mubr.f32.mxu0 0.0
    %306 = vmatmul.mubr.f32.gmra.mrb[0].mxu0 %v200
    %v307 = vpop.f32.mrb[0].mxu0
    %v308 = vadd.f32 %v168, %v307
    %v309 = vpop.f32.mrb[0].mxu0
    %v310 = vadd.f32 %v172, %v309
    %311 = vmatprep.mubr.f32.mxu0 0.0
    %312 = vmatmul.mubr.f32.gmra.mrb[0].mxu0 %v203
    %v313 = vpop.f32.mrb[0].mxu0
    %v314 = vadd.f32 %v168, %v313
    %v315 = vpop.f32.mrb[0].mxu0
    %v316 = vadd.f32 %v172, %v315
    %317 = vdwg.mxu0
    %318 = vmatprep.subr.mxu0 0.0
    %319 = vmatpush1.msra.mxu0 %v141
    %320 = vmatprep.subr.mxu0 0.0
    %321 = vmatpush1.msra.mxu0 %v144
    %322 = vmatprep.subr.mxu0 0.0
    %323 = vmatpush1.msra.mxu0 %v147
    %324 = vmatprep.subr.mxu0 0.0
    %325 = vmatpush1.msra.mxu0 %v150
    %326 = vmatprep.subr.mxu0 0.0
    %327 = vmatpush1.msra.mxu0 %v153
    %328 = vmatprep.subr.mxu0 0.0
    %329 = vmatpush1.msra.mxu0 %v156
    %330 = vmatprep.subr.mxu0 0.0
    %331 = vmatpush1.msra.mxu0 %v159
    %332 = vmatprep.subr.mxu0 0.0
    %333 = vmatpush1.msra.mxu0 %v162
    %334 = vmatprep.subr.mxu0 0.0
    %335 = vmatpush1.msra.mxu0 0.0
    %336 = vmatprep.subr.mxu0 0.0
    %337 = vmatpush1.msra.mxu0 0.0
    %338 = vmatprep.subr.mxu0 0.0
    %339 = vmatpush1.msra.mxu0 0.0
    %340 = vmatprep.subr.mxu0 0.0
    %341 = vmatpush1.msra.mxu0 0.0
    %342 = vmatprep.subr.mxu0 0.0
    %343 = vmatpush1.msra.mxu0 0.0
    %344 = vmatprep.subr.mxu0 0.0
    %345 = vmatpush1.msra.mxu0 0.0
    %346 = vmatprep.subr.mxu0 0.0
    %347 = vmatpush1.msra.mxu0 0.0
    %348 = vmatprep.subr.mxu0 0.0
    %349 = vmatpush1.msra.mxu0 0.0
    %350 = vmatprep.subr.mxu0 0.0
    %351 = vmatpush1.msra.mxu0 0.0
    %352 = vmatprep.subr.mxu0 0.0
    %353 = vmatpush1.msra.mxu0 0.0
    %354 = vmatprep.subr.mxu0 0.0
    %355 = vmatpush1.msra.mxu0 0.0
    %356 = vmatprep.subr.mxu0 0.0
    %357 = vmatpush1.msra.mxu0 0.0
    %358 = vmatprep.subr.mxu0 0.0
    %359 = vmatpush1.msra.mxu0 0.0
    %360 = vmatprep.subr.mxu0 0.0
    %361 = vmatpush1.msra.mxu0 0.0
    %362 = vmatprep.subr.mxu0 0.0
    %363 = vmatpush1.msra.mxu0 0.0
    %364 = vmatprep.subr.mxu0 0.0
    %365 = vmatpush1.msra.mxu0 0.0
    %366 = vmatprep.subr.mxu0 0.0
    %367 = vmatpush1.msra.mxu0 0.0
    %368 = vmatprep.subr.mxu0 0.0
    %369 = vmatpush1.msra.mxu0 0.0
    %370 = vmatprep.subr.mxu0 0.0
    %371 = vmatpush1.msra.mxu0 0.0
    %372 = vmatprep.subr.mxu0 0.0
    %373 = vmatpush1.msra.mxu0 0.0
    %374 = vmatprep.subr.mxu0 0.0
    %375 = vmatpush1.msra.mxu0 0.0
    %376 = vmatprep.subr.mxu0 0.0
    %377 = vmatpush1.msra.mxu0 0.0
    %378 = vmatprep.subr.mxu0 0.0
    %379 = vmatpush1.msra.mxu0 0.0
    %380 = vmatprep.subr.mxu0 0.0
    %381 = vmatpush1.msra.mxu0 0.0
    %382 = vmatprep.mubr.f32.mxu0 0.0
    %383 = vmatmul.mubr.f32.gmra.mrb[0].mxu0 %v182
    %v384 = vpop.f32.mrb[0].mxu0
    %v385 = vadd.f32 %v176, %v384
    %v386 = vpop.f32.mrb[0].mxu0
    %387 = vmatprep.mubr.f32.mxu0 0.0
    %388 = vmatmul.mubr.f32.gmra.mrb[0].mxu0 %v185
    %v389 = vpop.f32.mrb[0].mxu0
    %v390 = vadd.f32 %v176, %v389
    %v391 = vpop.f32.mrb[0].mxu0
    %392 = vmatprep.mubr.f32.mxu0 0.0
    %393 = vmatmul.mubr.f32.gmra.mrb[0].mxu0 %v188
    %v394 = vpop.f32.mrb[0].mxu0
    %v395 = vadd.f32 %v176, %v394
    %v396 = vpop.f32.mrb[0].mxu0
    %397 = vmatprep.mubr.f32.mxu0 0.0
    %398 = vmatmul.mubr.f32.gmra.mrb[0].mxu0 %v191
    %v399 = vpop.f32.mrb[0].mxu0
    %v400 = vadd.f32 %v176, %v399
    %v401 = vpop.f32.mrb[0].mxu0
    %402 = vmatprep.mubr.f32.mxu0 0.0
    %403 = vmatmul.mubr.f32.gmra.mrb[0].mxu0 %v194
    %v404 = vpop.f32.mrb[0].mxu0
    %v405 = vadd.f32 %v176, %v404
    %v406 = vpop.f32.mrb[0].mxu0
    %407 = vmatprep.mubr.f32.mxu0 0.0
    %408 = vmatmul.mubr.f32.gmra.mrb[0].mxu0 %v197
    %v409 = vpop.f32.mrb[0].mxu0
    %v410 = vadd.f32 %v176, %v409
    %v411 = vpop.f32.mrb[0].mxu0
    %412 = vmatprep.mubr.f32.mxu0 0.0
    %413 = vmatmul.mubr.f32.gmra.mrb[0].mxu0 %v200
    %v414 = vpop.f32.mrb[0].mxu0
    %v415 = vadd.f32 %v176, %v414
    %v416 = vpop.f32.mrb[0].mxu0
    %417 = vmatprep.mubr.f32.mxu0 0.0
    %418 = vmatmul.mubr.f32.gmra.mrb[0].mxu0 %v203
    %v419 = vpop.f32.mrb[0].mxu0
    %v420 = vadd.f32 %v176, %v419
    %v421 = vpop.f32.mrb[0].mxu0
    %422 = vdwg.mxu0
    %v424 = vlaneseq
    %v425 = vshrl.u32 %v424, 7
    %v426 = vsub.s32 0, %v425
    %v427 = vrot.slane %v130, %v426
    %v428 = vlaneseq
    %v429 = vshrl.u32 %v428, 7
    %v430 = vsub.s32 1, %v429
    %v431 = vrot.slane %v130, %v430
    %v432 = vlaneseq
    %v433 = vshrl.u32 %v432, 7
    %v434 = vsub.s32 2, %v433
    %v435 = vrot.slane %v130, %v434
    %439 = vmatprep.subr.mxu0 %v83
    %440 = vmatpush1.msra.mxu0 %v82
    %441 = vmatprep.subr.mxu0 %v86
    %442 = vmatpush1.msra.mxu0 %v85
    %443 = vmatprep.subr.mxu0 %v89
    %444 = vmatpush1.msra.mxu0 %v88
    %445 = vmatprep.subr.mxu0 %v92
    %446 = vmatpush1.msra.mxu0 %v91
    %447 = vmatprep.subr.mxu0 %v95
    %448 = vmatpush1.msra.mxu0 %v94
    %449 = vmatprep.subr.mxu0 %v98
    %450 = vmatpush1.msra.mxu0 %v97
    %451 = vmatprep.subr.mxu0 %v101
    %452 = vmatpush1.msra.mxu0 %v100
    %453 = vmatprep.subr.mxu0 %v104
    %454 = vmatpush1.msra.mxu0 %v103
    %455 = vmatprep.subr.mxu0 %v107
    %456 = vmatpush1.msra.mxu0 %v106
    %457 = vmatprep.subr.mxu0 %v110
    %458 = vmatpush1.msra.mxu0 %v109
    %459 = vmatprep.subr.mxu0 %v113
    %460 = vmatpush1.msra.mxu0 %v112
    %461 = vmatprep.subr.mxu0 %v116
    %462 = vmatpush1.msra.mxu0 %v115
    %463 = vmatprep.subr.mxu0 %v119
    %464 = vmatpush1.msra.mxu0 %v118
    %465 = vmatprep.subr.mxu0 %v122
    %466 = vmatpush1.msra.mxu0 %v121
    %467 = vmatprep.subr.mxu0 %v125
    %468 = vmatpush1.msra.mxu0 %v124
    %469 = vmatprep.subr.mxu0 %v128
    %470 = vmatpush1.msra.mxu0 %v127
    %471 = vmatprep.subr.mxu0 0.0
    %472 = vmatpush1.msra.mxu0 0.0
    %473 = vmatprep.subr.mxu0 0.0
    %474 = vmatpush1.msra.mxu0 0.0
    %475 = vmatprep.subr.mxu0 0.0
    %476 = vmatpush1.msra.mxu0 0.0
    %477 = vmatprep.subr.mxu0 0.0
    %478 = vmatpush1.msra.mxu0 0.0
    %479 = vmatprep.subr.mxu0 0.0
    %480 = vmatpush1.msra.mxu0 0.0
    %481 = vmatprep.subr.mxu0 0.0
    %482 = vmatpush1.msra.mxu0 0.0
    %483 = vmatprep.subr.mxu0 0.0
    %484 = vmatpush1.msra.mxu0 0.0
    %485 = vmatprep.subr.mxu0 0.0
    %486 = vmatpush1.msra.mxu0 0.0
    %487 = vmatprep.subr.mxu0 0.0
    %488 = vmatpush1.msra.mxu0 0.0
    %489 = vmatprep.subr.mxu0 0.0
    %490 = vmatpush1.msra.mxu0 0.0
    %491 = vmatprep.subr.mxu0 0.0
    %492 = vmatpush1.msra.mxu0 0.0
    %493 = vmatprep.subr.mxu0 0.0
    %494 = vmatpush1.msra.mxu0 0.0
    %495 = vmatprep.subr.mxu0 0.0
    %496 = vmatpush1.msra.mxu0 0.0
    %497 = vmatprep.subr.mxu0 0.0
    %498 = vmatpush1.msra.mxu0 0.0
    %499 = vmatprep.subr.mxu0 0.0
    %500 = vmatpush1.msra.mxu0 0.0
    %501 = vmatprep.subr.mxu0 0.0
    %502 = vmatpush1.msra.mxu0 0.0
    %503 = vmatprep.mubr.f32.mxu0 0.0
    %504 = vmatmul.mubr.f32.gmra.mrb[0].mxu0 0.0
    %v505 = vpop.f32.mrb[0].mxu0
    %v506 = vadd.f32 %v427, %v505
    %v507 = vpop.f32.mrb[0].mxu0
    %v508 = vadd.f32 %v431, %v507
    %509 = vdwg.mxu0
    %510 = vmatprep.subr.mxu0 0.0
    %511 = vmatpush1.msra.mxu0 %v84
    %512 = vmatprep.subr.mxu0 0.0
    %513 = vmatpush1.msra.mxu0 %v87
    %514 = vmatprep.subr.mxu0 0.0
    %515 = vmatpush1.msra.mxu0 %v90
    %516 = vmatprep.subr.mxu0 0.0
    %517 = vmatpush1.msra.mxu0 %v93
    %518 = vmatprep.subr.mxu0 0.0
    %519 = vmatpush1.msra.mxu0 %v96
    %520 = vmatprep.subr.mxu0 0.0
    %521 = vmatpush1.msra.mxu0 %v99
    %522 = vmatprep.subr.mxu0 0.0
    %523 = vmatpush1.msra.mxu0 %v102
    %524 = vmatprep.subr.mxu0 0.0
    %525 = vmatpush1.msra.mxu0 %v105
    %526 = vmatprep.subr.mxu0 0.0
    %527 = vmatpush1.msra.mxu0 %v108
    %528 = vmatprep.subr.mxu0 0.0
    %529 = vmatpush1.msra.mxu0 %v111
    %530 = vmatprep.subr.mxu0 0.0
    %531 = vmatpush1.msra.mxu0 %v114
    %532 = vmatprep.subr.mxu0 0.0
    %533 = vmatpush1.msra.mxu0 %v117
    %534 = vmatprep.subr.mxu0 0.0
    %535 = vmatpush1.msra.mxu0 %v120
    %536 = vmatprep.subr.mxu0 0.0
    %537 = vmatpush1.msra.mxu0 %v123
    %538 = vmatprep.subr.mxu0 0.0
    %539 = vmatpush1.msra.mxu0 %v126
    %540 = vmatprep.subr.mxu0 0.0
    %541 = vmatpush1.msra.mxu0 %v129
    %542 = vmatprep.subr.mxu0 0.0
    %543 = vmatpush1.msra.mxu0 0.0
    %544 = vmatprep.subr.mxu0 0.0
    %545 = vmatpush1.msra.mxu0 0.0
    %546 = vmatprep.subr.mxu0 0.0
    %547 = vmatpush1.msra.mxu0 0.0
    %548 = vmatprep.subr.mxu0 0.0
    %549 = vmatpush1.msra.mxu0 0.0
    %550 = vmatprep.subr.mxu0 0.0
    %551 = vmatpush1.msra.mxu0 0.0
    %552 = vmatprep.subr.mxu0 0.0
    %553 = vmatpush1.msra.mxu0 0.0
    %554 = vmatprep.subr.mxu0 0.0
    %555 = vmatpush1.msra.mxu0 0.0
    %556 = vmatprep.subr.mxu0 0.0
    %557 = vmatpush1.msra.mxu0 0.0
    %558 = vmatprep.subr.mxu0 0.0
    %559 = vmatpush1.msra.mxu0 0.0
    %560 = vmatprep.subr.mxu0 0.0
    %561 = vmatpush1.msra.mxu0 0.0
    %562 = vmatprep.subr.mxu0 0.0
    %563 = vmatpush1.msra.mxu0 0.0
    %564 = vmatprep.subr.mxu0 0.0
    %565 = vmatpush1.msra.mxu0 0.0
    %566 = vmatprep.subr.mxu0 0.0
    %567 = vmatpush1.msra.mxu0 0.0
    %568 = vmatprep.subr.mxu0 0.0
    %569 = vmatpush1.msra.mxu0 0.0
    %570 = vmatprep.subr.mxu0 0.0
    %571 = vmatpush1.msra.mxu0 0.0
    %572 = vmatprep.subr.mxu0 0.0
    %573 = vmatpush1.msra.mxu0 0.0
    %574 = vmatprep.mubr.f32.mxu0 0.0
    %575 = vmatmul.mubr.f32.gmra.mrb[0].mxu0 0.0
    %v576 = vpop.f32.mrb[0].mxu0
    %v577 = vadd.f32 %v435, %v576
    %v578 = vpop.f32.mrb[0].mxu0
    %579 = vdwg.mxu0
    %v580 = vadd.f32 %v272, %v506
    %v581 = vxor.u32 %v580, 2147483648
    %v582 = vmul.f32 %v581, 1.442695
    %v583 = vpow.pop %v582
    %v584 = vadd.f32 %v583, 1.0
    %v585 = vrcp.pop %v584
    %v586 = vmul.f32 1.0, %v585
    %v587 = vadd.f32 %v274, %v508
    %v588 = vxor.u32 %v587, 2147483648
    %v589 = vmul.f32 %v588, 1.442695
    %v590 = vpow.pop %v589
    %v591 = vadd.f32 %v590, 1.0
    %v592 = vrcp.pop %v591
    %v593 = vmul.f32 1.0, %v592
    %v594 = vmul.f32 %v586, %v577
    %v595 = vadd.f32 %v385, %v594
    %v596 = vtanh.pop %v595
    %v597 = vsub.f32 1.0, %v593
    %v598 = vmul.f32 %v597, %v596
    %v599 = vmul.f32 %v593, 0.0
    %v600 = vadd.f32 %v598, %v599
    %601 = vmatprep.subr.mxu0 %v83
    %602 = vmatpush1.msra.mxu0 %v82
    %603 = vmatprep.subr.mxu0 %v86
    %604 = vmatpush1.msra.mxu0 %v85
    %605 = vmatprep.subr.mxu0 %v89
    %606 = vmatpush1.msra.mxu0 %v88
    %607 = vmatprep.subr.mxu0 %v92
    %608 = vmatpush1.msra.mxu0 %v91
    %609 = vmatprep.subr.mxu0 %v95
    %610 = vmatpush1.msra.mxu0 %v94
    %611 = vmatprep.subr.mxu0 %v98
    %612 = vmatpush1.msra.mxu0 %v97
    %613 = vmatprep.subr.mxu0 %v101
    %614 = vmatpush1.msra.mxu0 %v100
    %615 = vmatprep.subr.mxu0 %v104
    %616 = vmatpush1.msra.mxu0 %v103
    %617 = vmatprep.subr.mxu0 %v107
    %618 = vmatpush1.msra.mxu0 %v106
    %619 = vmatprep.subr.mxu0 %v110
    %620 = vmatpush1.msra.mxu0 %v109
    %621 = vmatprep.subr.mxu0 %v113
    %622 = vmatpush1.msra.mxu0 %v112
    %623 = vmatprep.subr.mxu0 %v116
    %624 = vmatpush1.msra.mxu0 %v115
    %625 = vmatprep.subr.mxu0 %v119
    %626 = vmatpush1.msra.mxu0 %v118
    %627 = vmatprep.subr.mxu0 %v122
    %628 = vmatpush1.msra.mxu0 %v121
    %629 = vmatprep.subr.mxu0 %v125
    %630 = vmatpush1.msra.mxu0 %v124
    %631 = vmatprep.subr.mxu0 %v128
    %632 = vmatpush1.msra.mxu0 %v127
    %633 = vmatprep.subr.mxu0 0.0
    %634 = vmatpush1.msra.mxu0 0.0
    %635 = vmatprep.subr.mxu0 0.0
    %636 = vmatpush1.msra.mxu0 0.0
    %637 = vmatprep.subr.mxu0 0.0
    %638 = vmatpush1.msra.mxu0 0.0
    %639 = vmatprep.subr.mxu0 0.0
    %640 = vmatpush1.msra.mxu0 0.0
    %641 = vmatprep.subr.mxu0 0.0
    %642 = vmatpush1.msra.mxu0 0.0
    %643 = vmatprep.subr.mxu0 0.0
    %644 = vmatpush1.msra.mxu0 0.0
    %645 = vmatprep.subr.mxu0 0.0
    %646 = vmatpush1.msra.mxu0 0.0
    %647 = vmatprep.subr.mxu0 0.0
    %648 = vmatpush1.msra.mxu0 0.0
    %649 = vmatprep.subr.mxu0 0.0
    %650 = vmatpush1.msra.mxu0 0.0
    %651 = vmatprep.subr.mxu0 0.0
    %652 = vmatpush1.msra.mxu0 0.0
    %653 = vmatprep.subr.mxu0 0.0
    %654 = vmatpush1.msra.mxu0 0.0
    %655 = vmatprep.subr.mxu0 0.0
    %656 = vmatpush1.msra.mxu0 0.0
    %657 = vmatprep.subr.mxu0 0.0
    %658 = vmatpush1.msra.mxu0 0.0
    %659 = vmatprep.subr.mxu0 0.0
    %660 = vmatpush1.msra.mxu0 0.0
    %661 = vmatprep.subr.mxu0 0.0
    %662 = vmatpush1.msra.mxu0 0.0
    %663 = vmatprep.subr.mxu0 0.0
    %664 = vmatpush1.msra.mxu0 0.0
    %665 = vmatprep.mubr.f32.mxu0 0.0
    %666 = vmatmul.mubr.f32.gmra.mrb[0].mxu0 %v600
    %v667 = vpop.f32.mrb[0].mxu0
    %v668 = vadd.f32 %v427, %v667
    %v669 = vpop.f32.mrb[0].mxu0
    %v670 = vadd.f32 %v431, %v669
    %671 = vdwg.mxu0
    %672 = vmatprep.subr.mxu0 0.0
    %673 = vmatpush1.msra.mxu0 %v84
    %674 = vmatprep.subr.mxu0 0.0
    %675 = vmatpush1.msra.mxu0 %v87
    %676 = vmatprep.subr.mxu0 0.0
    %677 = vmatpush1.msra.mxu0 %v90
    %678 = vmatprep.subr.mxu0 0.0
    %679 = vmatpush1.msra.mxu0 %v93
    %680 = vmatprep.subr.mxu0 0.0
    %681 = vmatpush1.msra.mxu0 %v96
    %682 = vmatprep.subr.mxu0 0.0
    %683 = vmatpush1.msra.mxu0 %v99
    %684 = vmatprep.subr.mxu0 0.0
    %685 = vmatpush1.msra.mxu0 %v102
    %686 = vmatprep.subr.mxu0 0.0
    %687 = vmatpush1.msra.mxu0 %v105
    %688 = vmatprep.subr.mxu0 0.0
    %689 = vmatpush1.msra.mxu0 %v108
    %690 = vmatprep.subr.mxu0 0.0
    %691 = vmatpush1.msra.mxu0 %v111
    %692 = vmatprep.subr.mxu0 0.0
    %693 = vmatpush1.msra.mxu0 %v114
    %694 = vmatprep.subr.mxu0 0.0
    %695 = vmatpush1.msra.mxu0 %v117
    %696 = vmatprep.subr.mxu0 0.0
    %697 = vmatpush1.msra.mxu0 %v120
    %698 = vmatprep.subr.mxu0 0.0
    %699 = vmatpush1.msra.mxu0 %v123
    %700 = vmatprep.subr.mxu0 0.0
    %701 = vmatpush1.msra.mxu0 %v126
    %702 = vmatprep.subr.mxu0 0.0
    %703 = vmatpush1.msra.mxu0 %v129
    %704 = vmatprep.subr.mxu0 0.0
    %705 = vmatpush1.msra.mxu0 0.0
    %706 = vmatprep.subr.mxu0 0.0
    %707 = vmatpush1.msra.mxu0 0.0
    %708 = vmatprep.subr.mxu0 0.0
    %709 = vmatpush1.msra.mxu0 0.0
    %710 = vmatprep.subr.mxu0 0.0
    %711 = vmatpush1.msra.mxu0 0.0
    %712 = vmatprep.subr.mxu0 0.0
    %713 = vmatpush1.msra.mxu0 0.0
    %714 = vmatprep.subr.mxu0 0.0
    %715 = vmatpush1.msra.mxu0 0.0
    %716 = vmatprep.subr.mxu0 0.0
    %717 = vmatpush1.msra.mxu0 0.0
    %718 = vmatprep.subr.mxu0 0.0
    %719 = vmatpush1.msra.mxu0 0.0
    %720 = vmatprep.subr.mxu0 0.0
    %721 = vmatpush1.msra.mxu0 0.0
    %722 = vmatprep.subr.mxu0 0.0
    %723 = vmatpush1.msra.mxu0 0.0
    %724 = vmatprep.subr.mxu0 0.0
    %725 = vmatpush1.msra.mxu0 0.0
    %726 = vmatprep.subr.mxu0 0.0
    %727 = vmatpush1.msra.mxu0 0.0
    %728 = vmatprep.subr.mxu0 0.0
    %729 = vmatpush1.msra.mxu0 0.0
    %730 = vmatprep.subr.mxu0 0.0
    %731 = vmatpush1.msra.mxu0 0.0
    %732 = vmatprep.subr.mxu0 0.0
    %733 = vmatpush1.msra.mxu0 0.0
    %734 = vmatprep.subr.mxu0 0.0
    %735 = vmatpush1.msra.mxu0 0.0
    %736 = vmatprep.mubr.f32.mxu0 0.0
    %737 = vmatmul.mubr.f32.gmra.mrb[0].mxu0 %v600
    %v738 = vpop.f32.mrb[0].mxu0
    %v739 = vadd.f32 %v435, %v738
    %v740 = vpop.f32.mrb[0].mxu0
    %741 = vdwg.mxu0
    %v742 = vadd.f32 %v278, %v668
    %v743 = vxor.u32 %v742, 2147483648
    %v744 = vmul.f32 %v743, 1.442695
    %v745 = vpow.pop %v744
    %v746 = vadd.f32 %v745, 1.0
    %v747 = vrcp.pop %v746
    %v748 = vmul.f32 1.0, %v747
    %v749 = vadd.f32 %v280, %v670
    %v750 = vxor.u32 %v749, 2147483648
    %v751 = vmul.f32 %v750, 1.442695
    %v752 = vpow.pop %v751
    %v753 = vadd.f32 %v752, 1.0
    %v754 = vrcp.pop %v753
    %v755 = vmul.f32 1.0, %v754
    %v756 = vmul.f32 %v748, %v739
    %v757 = vadd.f32 %v390, %v756
    %v758 = vtanh.pop %v757
    %v759 = vsub.f32 1.0, %v755
    %v760 = vmul.f32 %v759, %v758
    %v761 = vmul.f32 %v755, %v600
    %v762 = vadd.f32 %v760, %v761
    %763 = vmatprep.subr.mxu0 %v83
    %764 = vmatpush1.msra.mxu0 %v82
    %765 = vmatprep.subr.mxu0 %v86
    %766 = vmatpush1.msra.mxu0 %v85
    %767 = vmatprep.subr.mxu0 %v89
    %768 = vmatpush1.msra.mxu0 %v88
    %769 = vmatprep.subr.mxu0 %v92
    %770 = vmatpush1.msra.mxu0 %v91
    %771 = vmatprep.subr.mxu0 %v95
    %772 = vmatpush1.msra.mxu0 %v94
    %773 = vmatprep.subr.mxu0 %v98
    %774 = vmatpush1.msra.mxu0 %v97
    %775 = vmatprep.subr.mxu0 %v101
    %776 = vmatpush1.msra.mxu0 %v100
    %777 = vmatprep.subr.mxu0 %v104
    %778 = vmatpush1.msra.mxu0 %v103
    %779 = vmatprep.subr.mxu0 %v107
    %780 = vmatpush1.msra.mxu0 %v106
    %781 = vmatprep.subr.mxu0 %v110
    %782 = vmatpush1.msra.mxu0 %v109
    %783 = vmatprep.subr.mxu0 %v113
    %784 = vmatpush1.msra.mxu0 %v112
    %785 = vmatprep.subr.mxu0 %v116
    %786 = vmatpush1.msra.mxu0 %v115
    %787 = vmatprep.subr.mxu0 %v119
    %788 = vmatpush1.msra.mxu0 %v118
    %789 = vmatprep.subr.mxu0 %v122
    %790 = vmatpush1.msra.mxu0 %v121
    %791 = vmatprep.subr.mxu0 %v125
    %792 = vmatpush1.msra.mxu0 %v124
    %793 = vmatprep.subr.mxu0 %v128
    %794 = vmatpush1.msra.mxu0 %v127
    %795 = vmatprep.subr.mxu0 0.0
    %796 = vmatpush1.msra.mxu0 0.0
    %797 = vmatprep.subr.mxu0 0.0
    %798 = vmatpush1.msra.mxu0 0.0
    %799 = vmatprep.subr.mxu0 0.0
    %800 = vmatpush1.msra.mxu0 0.0
    %801 = vmatprep.subr.mxu0 0.0
    %802 = vmatpush1.msra.mxu0 0.0
    %803 = vmatprep.subr.mxu0 0.0
    %804 = vmatpush1.msra.mxu0 0.0
    %805 = vmatprep.subr.mxu0 0.0
    %806 = vmatpush1.msra.mxu0 0.0
    %807 = vmatprep.subr.mxu0 0.0
    %808 = vmatpush1.msra.mxu0 0.0
    %809 = vmatprep.subr.mxu0 0.0
    %810 = vmatpush1.msra.mxu0 0.0
    %811 = vmatprep.subr.mxu0 0.0
    %812 = vmatpush1.msra.mxu0 0.0
    %813 = vmatprep.subr.mxu0 0.0
    %814 = vmatpush1.msra.mxu0 0.0
    %815 = vmatprep.subr.mxu0 0.0
    %816 = vmatpush1.msra.mxu0 0.0
    %817 = vmatprep.subr.mxu0 0.0
    %818 = vmatpush1.msra.mxu0 0.0
    %819 = vmatprep.subr.mxu0 0.0
    %820 = vmatpush1.msra.mxu0 0.0
    %821 = vmatprep.subr.mxu0 0.0
    %822 = vmatpush1.msra.mxu0 0.0
    %823 = vmatprep.subr.mxu0 0.0
    %824 = vmatpush1.msra.mxu0 0.0
    %825 = vmatprep.subr.mxu0 0.0
    %826 = vmatpush1.msra.mxu0 0.0
    %827 = vmatprep.mubr.f32.mxu0 0.0
    %828 = vmatmul.mubr.f32.gmra.mrb[0].mxu0 %v762
    %v829 = vpop.f32.mrb[0].mxu0
    %v830 = vadd.f32 %v427, %v829
    %v831 = vpop.f32.mrb[0].mxu0
    %v832 = vadd.f32 %v431, %v831
    %833 = vdwg.mxu0
    %834 = vmatprep.subr.mxu0 0.0
    %835 = vmatpush1.msra.mxu0 %v84
    %836 = vmatprep.subr.mxu0 0.0
    %837 = vmatpush1.msra.mxu0 %v87
    %838 = vmatprep.subr.mxu0 0.0
    %839 = vmatpush1.msra.mxu0 %v90
    %840 = vmatprep.subr.mxu0 0.0
    %841 = vmatpush1.msra.mxu0 %v93
    %842 = vmatprep.subr.mxu0 0.0
    %843 = vmatpush1.msra.mxu0 %v96
    %844 = vmatprep.subr.mxu0 0.0
    %845 = vmatpush1.msra.mxu0 %v99
    %846 = vmatprep.subr.mxu0 0.0
    %847 = vmatpush1.msra.mxu0 %v102
    %848 = vmatprep.subr.mxu0 0.0
    %849 = vmatpush1.msra.mxu0 %v105
    %850 = vmatprep.subr.mxu0 0.0
    %851 = vmatpush1.msra.mxu0 %v108
    %852 = vmatprep.subr.mxu0 0.0
    %853 = vmatpush1.msra.mxu0 %v111
    %854 = vmatprep.subr.mxu0 0.0
    %855 = vmatpush1.msra.mxu0 %v114
    %856 = vmatprep.subr.mxu0 0.0
    %857 = vmatpush1.msra.mxu0 %v117
    %858 = vmatprep.subr.mxu0 0.0
    %859 = vmatpush1.msra.mxu0 %v120
    %860 = vmatprep.subr.mxu0 0.0
    %861 = vmatpush1.msra.mxu0 %v123
    %862 = vmatprep.subr.mxu0 0.0
    %863 = vmatpush1.msra.mxu0 %v126
    %864 = vmatprep.subr.mxu0 0.0
    %865 = vmatpush1.msra.mxu0 %v129
    %866 = vmatprep.subr.mxu0 0.0
    %867 = vmatpush1.msra.mxu0 0.0
    %868 = vmatprep.subr.mxu0 0.0
    %869 = vmatpush1.msra.mxu0 0.0
    %870 = vmatprep.subr.mxu0 0.0
    %871 = vmatpush1.msra.mxu0 0.0
    %872 = vmatprep.subr.mxu0 0.0
    %873 = vmatpush1.msra.mxu0 0.0
    %874 = vmatprep.subr.mxu0 0.0
    %875 = vmatpush1.msra.mxu0 0.0
    %876 = vmatprep.subr.mxu0 0.0
    %877 = vmatpush1.msra.mxu0 0.0
    %878 = vmatprep.subr.mxu0 0.0
    %879 = vmatpush1.msra.mxu0 0.0
    %880 = vmatprep.subr.mxu0 0.0
    %881 = vmatpush1.msra.mxu0 0.0
    %882 = vmatprep.subr.mxu0 0.0
    %883 = vmatpush1.msra.mxu0 0.0
    %884 = vmatprep.subr.mxu0 0.0
    %885 = vmatpush1.msra.mxu0 0.0
    %886 = vmatprep.subr.mxu0 0.0
    %887 = vmatpush1.msra.mxu0 0.0
    %888 = vmatprep.subr.mxu0 0.0
    %889 = vmatpush1.msra.mxu0 0.0
    %890 = vmatprep.subr.mxu0 0.0
    %891 = vmatpush1.msra.mxu0 0.0
    %892 = vmatprep.subr.mxu0 0.0
    %893 = vmatpush1.msra.mxu0 0.0
    %894 = vmatprep.subr.mxu0 0.0
    %895 = vmatpush1.msra.mxu0 0.0
    %896 = vmatprep.subr.mxu0 0.0
    %897 = vmatpush1.msra.mxu0 0.0
    %898 = vmatprep.mubr.f32.mxu0 0.0
    %899 = vmatmul.mubr.f32.gmra.mrb[0].mxu0 %v762
    %v900 = vpop.f32.mrb[0].mxu0
    %v901 = vadd.f32 %v435, %v900
    %v902 = vpop.f32.mrb[0].mxu0
    %903 = vdwg.mxu0
    %v904 = vadd.f32 %v284, %v830
    %v905 = vxor.u32 %v904, 2147483648
    %v906 = vmul.f32 %v905, 1.442695
    %v907 = vpow.pop %v906
    %v908 = vadd.f32 %v907, 1.0
    %v909 = vrcp.pop %v908
    %v910 = vmul.f32 1.0, %v909
    %v911 = vadd.f32 %v286, %v832
    %v912 = vxor.u32 %v911, 2147483648
    %v913 = vmul.f32 %v912, 1.442695
    %v914 = vpow.pop %v913
    %v915 = vadd.f32 %v914, 1.0
    %v916 = vrcp.pop %v915
    %v917 = vmul.f32 1.0, %v916
    %v918 = vmul.f32 %v910, %v901
    %v919 = vadd.f32 %v395, %v918
    %v920 = vtanh.pop %v919
    %v921 = vsub.f32 1.0, %v917
    %v922 = vmul.f32 %v921, %v920
    %v923 = vmul.f32 %v917, %v762
    %v924 = vadd.f32 %v922, %v923
    %925 = vmatprep.subr.mxu0 %v83
    %926 = vmatpush1.msra.mxu0 %v82
    %927 = vmatprep.subr.mxu0 %v86
    %928 = vmatpush1.msra.mxu0 %v85
    %929 = vmatprep.subr.mxu0 %v89
    %930 = vmatpush1.msra.mxu0 %v88
    %931 = vmatprep.subr.mxu0 %v92
    %932 = vmatpush1.msra.mxu0 %v91
    %933 = vmatprep.subr.mxu0 %v95
    %934 = vmatpush1.msra.mxu0 %v94
    %935 = vmatprep.subr.mxu0 %v98
    %936 = vmatpush1.msra.mxu0 %v97
    %937 = vmatprep.subr.mxu0 %v101
    %938 = vmatpush1.msra.mxu0 %v100
    %939 = vmatprep.subr.mxu0 %v104
    %940 = vmatpush1.msra.mxu0 %v103
    %941 = vmatprep.subr.mxu0 %v107
    %942 = vmatpush1.msra.mxu0 %v106
    %943 = vmatprep.subr.mxu0 %v110
    %944 = vmatpush1.msra.mxu0 %v109
    %945 = vmatprep.subr.mxu0 %v113
    %946 = vmatpush1.msra.mxu0 %v112
    %947 = vmatprep.subr.mxu0 %v116
    %948 = vmatpush1.msra.mxu0 %v115
    %949 = vmatprep.subr.mxu0 %v119
    %950 = vmatpush1.msra.mxu0 %v118
    %951 = vmatprep.subr.mxu0 %v122
    %952 = vmatpush1.msra.mxu0 %v121
    %953 = vmatprep.subr.mxu0 %v125
    %954 = vmatpush1.msra.mxu0 %v124
    %955 = vmatprep.subr.mxu0 %v128
    %956 = vmatpush1.msra.mxu0 %v127
    %957 = vmatprep.subr.mxu0 0.0
    %958 = vmatpush1.msra.mxu0 0.0
    %959 = vmatprep.subr.mxu0 0.0
    %960 = vmatpush1.msra.mxu0 0.0
    %961 = vmatprep.subr.mxu0 0.0
    %962 = vmatpush1.msra.mxu0 0.0
    %963 = vmatprep.subr.mxu0 0.0
    %964 = vmatpush1.msra.mxu0 0.0
    %965 = vmatprep.subr.mxu0 0.0
    %966 = vmatpush1.msra.mxu0 0.0
    %967 = vmatprep.subr.mxu0 0.0
    %968 = vmatpush1.msra.mxu0 0.0
    %969 = vmatprep.subr.mxu0 0.0
    %970 = vmatpush1.msra.mxu0 0.0
    %971 = vmatprep.subr.mxu0 0.0
    %972 = vmatpush1.msra.mxu0 0.0
    %973 = vmatprep.subr.mxu0 0.0
    %974 = vmatpush1.msra.mxu0 0.0
    %975 = vmatprep.subr.mxu0 0.0
    %976 = vmatpush1.msra.mxu0 0.0
    %977 = vmatprep.subr.mxu0 0.0
    %978 = vmatpush1.msra.mxu0 0.0
    %979 = vmatprep.subr.mxu0 0.0
    %980 = vmatpush1.msra.mxu0 0.0
    %981 = vmatprep.subr.mxu0 0.0
    %982 = vmatpush1.msra.mxu0 0.0
    %983 = vmatprep.subr.mxu0 0.0
    %984 = vmatpush1.msra.mxu0 0.0
    %985 = vmatprep.subr.mxu0 0.0
    %986 = vmatpush1.msra.mxu0 0.0
    %987 = vmatprep.subr.mxu0 0.0
    %988 = vmatpush1.msra.mxu0 0.0
    %989 = vmatprep.mubr.f32.mxu0 0.0
    %990 = vmatmul.mubr.f32.gmra.mrb[0].mxu0 %v924
    %v991 = vpop.f32.mrb[0].mxu0
    %v992 = vadd.f32 %v427, %v991
    %v993 = vpop.f32.mrb[0].mxu0
    %v994 = vadd.f32 %v431, %v993
    %995 = vdwg.mxu0
    %996 = vmatprep.subr.mxu0 0.0
    %997 = vmatpush1.msra.mxu0 %v84
    %998 = vmatprep.subr.mxu0 0.0
    %999 = vmatpush1.msra.mxu0 %v87
    %1000 = vmatprep.subr.mxu0 0.0
    %1001 = vmatpush1.msra.mxu0 %v90
    %1002 = vmatprep.subr.mxu0 0.0
    %1003 = vmatpush1.msra.mxu0 %v93
    %1004 = vmatprep.subr.mxu0 0.0
    %1005 = vmatpush1.msra.mxu0 %v96
    %1006 = vmatprep.subr.mxu0 0.0
    %1007 = vmatpush1.msra.mxu0 %v99
    %1008 = vmatprep.subr.mxu0 0.0
    %1009 = vmatpush1.msra.mxu0 %v102
    %1010 = vmatprep.subr.mxu0 0.0
    %1011 = vmatpush1.msra.mxu0 %v105
    %1012 = vmatprep.subr.mxu0 0.0
    %1013 = vmatpush1.msra.mxu0 %v108
    %1014 = vmatprep.subr.mxu0 0.0
    %1015 = vmatpush1.msra.mxu0 %v111
    %1016 = vmatprep.subr.mxu0 0.0
    %1017 = vmatpush1.msra.mxu0 %v114
    %1018 = vmatprep.subr.mxu0 0.0
    %1019 = vmatpush1.msra.mxu0 %v117
    %1020 = vmatprep.subr.mxu0 0.0
    %1021 = vmatpush1.msra.mxu0 %v120
    %1022 = vmatprep.subr.mxu0 0.0
    %1023 = vmatpush1.msra.mxu0 %v123
    %1024 = vmatprep.subr.mxu0 0.0
    %1025 = vmatpush1.msra.mxu0 %v126
    %1026 = vmatprep.subr.mxu0 0.0
    %1027 = vmatpush1.msra.mxu0 %v129
    %1028 = vmatprep.subr.mxu0 0.0
    %1029 = vmatpush1.msra.mxu0 0.0
    %1030 = vmatprep.subr.mxu0 0.0
    %1031 = vmatpush1.msra.mxu0 0.0
    %1032 = vmatprep.subr.mxu0 0.0
    %1033 = vmatpush1.msra.mxu0 0.0
    %1034 = vmatprep.subr.mxu0 0.0
    %1035 = vmatpush1.msra.mxu0 0.0
    %1036 = vmatprep.subr.mxu0 0.0
    %1037 = vmatpush1.msra.mxu0 0.0
    %1038 = vmatprep.subr.mxu0 0.0
    %1039 = vmatpush1.msra.mxu0 0.0
    %1040 = vmatprep.subr.mxu0 0.0
    %1041 = vmatpush1.msra.mxu0 0.0
    %1042 = vmatprep.subr.mxu0 0.0
    %1043 = vmatpush1.msra.mxu0 0.0
    %1044 = vmatprep.subr.mxu0 0.0
    %1045 = vmatpush1.msra.mxu0 0.0
    %1046 = vmatprep.subr.mxu0 0.0
    %1047 = vmatpush1.msra.mxu0 0.0
    %1048 = vmatprep.subr.mxu0 0.0
    %1049 = vmatpush1.msra.mxu0 0.0
    %1050 = vmatprep.subr.mxu0 0.0
    %1051 = vmatpush1.msra.mxu0 0.0
    %1052 = vmatprep.subr.mxu0 0.0
    %1053 = vmatpush1.msra.mxu0 0.0
    %1054 = vmatprep.subr.mxu0 0.0
    %1055 = vmatpush1.msra.mxu0 0.0
    %1056 = vmatprep.subr.mxu0 0.0
    %1057 = vmatpush1.msra.mxu0 0.0
    %1058 = vmatprep.subr.mxu0 0.0
    %1059 = vmatpush1.msra.mxu0 0.0
    %1060 = vmatprep.mubr.f32.mxu0 0.0
    %1061 = vmatmul.mubr.f32.gmra.mrb[0].mxu0 %v924
    %v1062 = vpop.f32.mrb[0].mxu0
    %v1063 = vadd.f32 %v435, %v1062
    %v1064 = vpop.f32.mrb[0].mxu0
    %1065 = vdwg.mxu0
    %v1066 = vadd.f32 %v290, %v992
    %v1067 = vxor.u32 %v1066, 2147483648
    %v1068 = vmul.f32 %v1067, 1.442695
    %v1069 = vpow.pop %v1068
    %v1070 = vadd.f32 %v1069, 1.0
    %v1071 = vrcp.pop %v1070
    %v1072 = vmul.f32 1.0, %v1071
    %v1073 = vadd.f32 %v292, %v994
    %v1074 = vxor.u32 %v1073, 2147483648
    %v1075 = vmul.f32 %v1074, 1.442695
    %v1076 = vpow.pop %v1075
    %v1077 = vadd.f32 %v1076, 1.0
    %v1078 = vrcp.pop %v1077
    %v1079 = vmul.f32 1.0, %v1078
    %v1080 = vmul.f32 %v1072, %v1063
    %v1081 = vadd.f32 %v400, %v1080
    %v1082 = vtanh.pop %v1081
    %v1083 = vsub.f32 1.0, %v1079
    %v1084 = vmul.f32 %v1083, %v1082
    %v1085 = vmul.f32 %v1079, %v924
    %v1086 = vadd.f32 %v1084, %v1085
    %1087 = vmatprep.subr.mxu0 %v83
    %1088 = vmatpush1.msra.mxu0 %v82
    %1089 = vmatprep.subr.mxu0 %v86
    %1090 = vmatpush1.msra.mxu0 %v85
    %1091 = vmatprep.subr.mxu0 %v89
    %1092 = vmatpush1.msra.mxu0 %v88
    %1093 = vmatprep.subr.mxu0 %v92
    %1094 = vmatpush1.msra.mxu0 %v91
    %1095 = vmatprep.subr.mxu0 %v95
    %1096 = vmatpush1.msra.mxu0 %v94
    %1097 = vmatprep.subr.mxu0 %v98
    %1098 = vmatpush1.msra.mxu0 %v97
    %1099 = vmatprep.subr.mxu0 %v101
    %1100 = vmatpush1.msra.mxu0 %v100
    %1101 = vmatprep.subr.mxu0 %v104
    %1102 = vmatpush1.msra.mxu0 %v103
    %1103 = vmatprep.subr.mxu0 %v107
    %1104 = vmatpush1.msra.mxu0 %v106
    %1105 = vmatprep.subr.mxu0 %v110
    %1106 = vmatpush1.msra.mxu0 %v109
    %1107 = vmatprep.subr.mxu0 %v113
    %1108 = vmatpush1.msra.mxu0 %v112
    %1109 = vmatprep.subr.mxu0 %v116
    %1110 = vmatpush1.msra.mxu0 %v115
    %1111 = vmatprep.subr.mxu0 %v119
    %1112 = vmatpush1.msra.mxu0 %v118
    %1113 = vmatprep.subr.mxu0 %v122
    %1114 = vmatpush1.msra.mxu0 %v121
    %1115 = vmatprep.subr.mxu0 %v125
    %1116 = vmatpush1.msra.mxu0 %v124
    %1117 = vmatprep.subr.mxu0 %v128
    %1118 = vmatpush1.msra.mxu0 %v127
    %1119 = vmatprep.subr.mxu0 0.0
    %1120 = vmatpush1.msra.mxu0 0.0
    %1121 = vmatprep.subr.mxu0 0.0
    %1122 = vmatpush1.msra.mxu0 0.0
    %1123 = vmatprep.subr.mxu0 0.0
    %1124 = vmatpush1.msra.mxu0 0.0
    %1125 = vmatprep.subr.mxu0 0.0
    %1126 = vmatpush1.msra.mxu0 0.0
    %1127 = vmatprep.subr.mxu0 0.0
    %1128 = vmatpush1.msra.mxu0 0.0
    %1129 = vmatprep.subr.mxu0 0.0
    %1130 = vmatpush1.msra.mxu0 0.0
    %1131 = vmatprep.subr.mxu0 0.0
    %1132 = vmatpush1.msra.mxu0 0.0
    %1133 = vmatprep.subr.mxu0 0.0
    %1134 = vmatpush1.msra.mxu0 0.0
    %1135 = vmatprep.subr.mxu0 0.0
    %1136 = vmatpush1.msra.mxu0 0.0
    %1137 = vmatprep.subr.mxu0 0.0
    %1138 = vmatpush1.msra.mxu0 0.0
    %1139 = vmatprep.subr.mxu0 0.0
    %1140 = vmatpush1.msra.mxu0 0.0
    %1141 = vmatprep.subr.mxu0 0.0
    %1142 = vmatpush1.msra.mxu0 0.0
    %1143 = vmatprep.subr.mxu0 0.0
    %1144 = vmatpush1.msra.mxu0 0.0
    %1145 = vmatprep.subr.mxu0 0.0
    %1146 = vmatpush1.msra.mxu0 0.0
    %1147 = vmatprep.subr.mxu0 0.0
    %1148 = vmatpush1.msra.mxu0 0.0
    %1149 = vmatprep.subr.mxu0 0.0
    %1150 = vmatpush1.msra.mxu0 0.0
    %1151 = vmatprep.mubr.f32.mxu0 0.0
    %1152 = vmatmul.mubr.f32.gmra.mrb[0].mxu0 %v1086
    %v1153 = vpop.f32.mrb[0].mxu0
    %v1154 = vadd.f32 %v427, %v1153
    %v1155 = vpop.f32.mrb[0].mxu0
    %v1156 = vadd.f32 %v431, %v1155
    %1157 = vdwg.mxu0
    %1158 = vmatprep.subr.mxu0 0.0
    %1159 = vmatpush1.msra.mxu0 %v84
    %1160 = vmatprep.subr.mxu0 0.0
    %1161 = vmatpush1.msra.mxu0 %v87
    %1162 = vmatprep.subr.mxu0 0.0
    %1163 = vmatpush1.msra.mxu0 %v90
    %1164 = vmatprep.subr.mxu0 0.0
    %1165 = vmatpush1.msra.mxu0 %v93
    %1166 = vmatprep.subr.mxu0 0.0
    %1167 = vmatpush1.msra.mxu0 %v96
    %1168 = vmatprep.subr.mxu0 0.0
    %1169 = vmatpush1.msra.mxu0 %v99
    %1170 = vmatprep.subr.mxu0 0.0
    %1171 = vmatpush1.msra.mxu0 %v102
    %1172 = vmatprep.subr.mxu0 0.0
    %1173 = vmatpush1.msra.mxu0 %v105
    %1174 = vmatprep.subr.mxu0 0.0
    %1175 = vmatpush1.msra.mxu0 %v108
    %1176 = vmatprep.subr.mxu0 0.0
    %1177 = vmatpush1.msra.mxu0 %v111
    %1178 = vmatprep.subr.mxu0 0.0
    %1179 = vmatpush1.msra.mxu0 %v114
    %1180 = vmatprep.subr.mxu0 0.0
    %1181 = vmatpush1.msra.mxu0 %v117
    %1182 = vmatprep.subr.mxu0 0.0
    %1183 = vmatpush1.msra.mxu0 %v120
    %1184 = vmatprep.subr.mxu0 0.0
    %1185 = vmatpush1.msra.mxu0 %v123
    %1186 = vmatprep.subr.mxu0 0.0
    %1187 = vmatpush1.msra.mxu0 %v126
    %1188 = vmatprep.subr.mxu0 0.0
    %1189 = vmatpush1.msra.mxu0 %v129
    %1190 = vmatprep.subr.mxu0 0.0
    %1191 = vmatpush1.msra.mxu0 0.0
    %1192 = vmatprep.subr.mxu0 0.0
    %1193 = vmatpush1.msra.mxu0 0.0
    %1194 = vmatprep.subr.mxu0 0.0
    %1195 = vmatpush1.msra.mxu0 0.0
    %1196 = vmatprep.subr.mxu0 0.0
    %1197 = vmatpush1.msra.mxu0 0.0
    %1198 = vmatprep.subr.mxu0 0.0
    %1199 = vmatpush1.msra.mxu0 0.0
    %1200 = vmatprep.subr.mxu0 0.0
    %1201 = vmatpush1.msra.mxu0 0.0
    %1202 = vmatprep.subr.mxu0 0.0
    %1203 = vmatpush1.msra.mxu0 0.0
    %1204 = vmatprep.subr.mxu0 0.0
    %1205 = vmatpush1.msra.mxu0 0.0
    %1206 = vmatprep.subr.mxu0 0.0
    %1207 = vmatpush1.msra.mxu0 0.0
    %1208 = vmatprep.subr.mxu0 0.0
    %1209 = vmatpush1.msra.mxu0 0.0
    %1210 = vmatprep.subr.mxu0 0.0
    %1211 = vmatpush1.msra.mxu0 0.0
    %1212 = vmatprep.subr.mxu0 0.0
    %1213 = vmatpush1.msra.mxu0 0.0
    %1214 = vmatprep.subr.mxu0 0.0
    %1215 = vmatpush1.msra.mxu0 0.0
    %1216 = vmatprep.subr.mxu0 0.0
    %1217 = vmatpush1.msra.mxu0 0.0
    %1218 = vmatprep.subr.mxu0 0.0
    %1219 = vmatpush1.msra.mxu0 0.0
    %1220 = vmatprep.subr.mxu0 0.0
    %1221 = vmatpush1.msra.mxu0 0.0
    %1222 = vmatprep.mubr.f32.mxu0 0.0
    %1223 = vmatmul.mubr.f32.gmra.mrb[0].mxu0 %v1086
    %v1224 = vpop.f32.mrb[0].mxu0
    %v1225 = vadd.f32 %v435, %v1224
    %v1226 = vpop.f32.mrb[0].mxu0
    %1227 = vdwg.mxu0
    %v1228 = vadd.f32 %v296, %v1154
    %v1229 = vxor.u32 %v1228, 2147483648
    %v1230 = vmul.f32 %v1229, 1.442695
    %v1231 = vpow.pop %v1230
    %v1232 = vadd.f32 %v1231, 1.0
    %v1233 = vrcp.pop %v1232
    %v1234 = vmul.f32 1.0, %v1233
    %v1235 = vadd.f32 %v298, %v1156
    %v1236 = vxor.u32 %v1235, 2147483648
    %v1237 = vmul.f32 %v1236, 1.442695
    %v1238 = vpow.pop %v1237
    %v1239 = vadd.f32 %v1238, 1.0
    %v1240 = vrcp.pop %v1239
    %v1241 = vmul.f32 1.0, %v1240
    %v1242 = vmul.f32 %v1234, %v1225
    %v1243 = vadd.f32 %v405, %v1242
    %v1244 = vtanh.pop %v1243
    %v1245 = vsub.f32 1.0, %v1241
    %v1246 = vmul.f32 %v1245, %v1244
    %v1247 = vmul.f32 %v1241, %v1086
    %v1248 = vadd.f32 %v1246, %v1247
    %1249 = vmatprep.subr.mxu0 %v83
    %1250 = vmatpush1.msra.mxu0 %v82
    %1251 = vmatprep.subr.mxu0 %v86
    %1252 = vmatpush1.msra.mxu0 %v85
    %1253 = vmatprep.subr.mxu0 %v89
    %1254 = vmatpush1.msra.mxu0 %v88
    %1255 = vmatprep.subr.mxu0 %v92
    %1256 = vmatpush1.msra.mxu0 %v91
    %1257 = vmatprep.subr.mxu0 %v95
    %1258 = vmatpush1.msra.mxu0 %v94
    %1259 = vmatprep.subr.mxu0 %v98
    %1260 = vmatpush1.msra.mxu0 %v97
    %1261 = vmatprep.subr.mxu0 %v101
    %1262 = vmatpush1.msra.mxu0 %v100
    %1263 = vmatprep.subr.mxu0 %v104
    %1264 = vmatpush1.msra.mxu0 %v103
    %1265 = vmatprep.subr.mxu0 %v107
    %1266 = vmatpush1.msra.mxu0 %v106
    %1267 = vmatprep.subr.mxu0 %v110
    %1268 = vmatpush1.msra.mxu0 %v109
    %1269 = vmatprep.subr.mxu0 %v113
    %1270 = vmatpush1.msra.mxu0 %v112
    %1271 = vmatprep.subr.mxu0 %v116
    %1272 = vmatpush1.msra.mxu0 %v115
    %1273 = vmatprep.subr.mxu0 %v119
    %1274 = vmatpush1.msra.mxu0 %v118
    %1275 = vmatprep.subr.mxu0 %v122
    %1276 = vmatpush1.msra.mxu0 %v121
    %1277 = vmatprep.subr.mxu0 %v125
    %1278 = vmatpush1.msra.mxu0 %v124
    %1279 = vmatprep.subr.mxu0 %v128
    %1280 = vmatpush1.msra.mxu0 %v127
    %1281 = vmatprep.subr.mxu0 0.0
    %1282 = vmatpush1.msra.mxu0 0.0
    %1283 = vmatprep.subr.mxu0 0.0
    %1284 = vmatpush1.msra.mxu0 0.0
    %1285 = vmatprep.subr.mxu0 0.0
    %1286 = vmatpush1.msra.mxu0 0.0
    %1287 = vmatprep.subr.mxu0 0.0
    %1288 = vmatpush1.msra.mxu0 0.0
    %1289 = vmatprep.subr.mxu0 0.0
    %1290 = vmatpush1.msra.mxu0 0.0
    %1291 = vmatprep.subr.mxu0 0.0
    %1292 = vmatpush1.msra.mxu0 0.0
    %1293 = vmatprep.subr.mxu0 0.0
    %1294 = vmatpush1.msra.mxu0 0.0
    %1295 = vmatprep.subr.mxu0 0.0
    %1296 = vmatpush1.msra.mxu0 0.0
    %1297 = vmatprep.subr.mxu0 0.0
    %1298 = vmatpush1.msra.mxu0 0.0
    %1299 = vmatprep.subr.mxu0 0.0
    %1300 = vmatpush1.msra.mxu0 0.0
    %1301 = vmatprep.subr.mxu0 0.0
    %1302 = vmatpush1.msra.mxu0 0.0
    %1303 = vmatprep.subr.mxu0 0.0
    %1304 = vmatpush1.msra.mxu0 0.0
    %1305 = vmatprep.subr.mxu0 0.0
    %1306 = vmatpush1.msra.mxu0 0.0
    %1307 = vmatprep.subr.mxu0 0.0
    %1308 = vmatpush1.msra.mxu0 0.0
    %1309 = vmatprep.subr.mxu0 0.0
    %1310 = vmatpush1.msra.mxu0 0.0
    %1311 = vmatprep.subr.mxu0 0.0
    %1312 = vmatpush1.msra.mxu0 0.0
    %1313 = vmatprep.mubr.f32.mxu0 0.0
    %1314 = vmatmul.mubr.f32.gmra.mrb[0].mxu0 %v1248
    %v1315 = vpop.f32.mrb[0].mxu0
    %v1316 = vadd.f32 %v427, %v1315
    %v1317 = vpop.f32.mrb[0].mxu0
    %v1318 = vadd.f32 %v431, %v1317
    %1319 = vdwg.mxu0
    %1320 = vmatprep.subr.mxu0 0.0
    %1321 = vmatpush1.msra.mxu0 %v84
    %1322 = vmatprep.subr.mxu0 0.0
    %1323 = vmatpush1.msra.mxu0 %v87
    %1324 = vmatprep.subr.mxu0 0.0
    %1325 = vmatpush1.msra.mxu0 %v90
    %1326 = vmatprep.subr.mxu0 0.0
    %1327 = vmatpush1.msra.mxu0 %v93
    %1328 = vmatprep.subr.mxu0 0.0
    %1329 = vmatpush1.msra.mxu0 %v96
    %1330 = vmatprep.subr.mxu0 0.0
    %1331 = vmatpush1.msra.mxu0 %v99
    %1332 = vmatprep.subr.mxu0 0.0
    %1333 = vmatpush1.msra.mxu0 %v102
    %1334 = vmatprep.subr.mxu0 0.0
    %1335 = vmatpush1.msra.mxu0 %v105
    %1336 = vmatprep.subr.mxu0 0.0
    %1337 = vmatpush1.msra.mxu0 %v108
    %1338 = vmatprep.subr.mxu0 0.0
    %1339 = vmatpush1.msra.mxu0 %v111
    %1340 = vmatprep.subr.mxu0 0.0
    %1341 = vmatpush1.msra.mxu0 %v114
    %1342 = vmatprep.subr.mxu0 0.0
    %1343 = vmatpush1.msra.mxu0 %v117
    %1344 = vmatprep.subr.mxu0 0.0
    %1345 = vmatpush1.msra.mxu0 %v120
    %1346 = vmatprep.subr.mxu0 0.0
    %1347 = vmatpush1.msra.mxu0 %v123
    %1348 = vmatprep.subr.mxu0 0.0
    %1349 = vmatpush1.msra.mxu0 %v126
    %1350 = vmatprep.subr.mxu0 0.0
    %1351 = vmatpush1.msra.mxu0 %v129
    %1352 = vmatprep.subr.mxu0 0.0
    %1353 = vmatpush1.msra.mxu0 0.0
    %1354 = vmatprep.subr.mxu0 0.0
    %1355 = vmatpush1.msra.mxu0 0.0
    %1356 = vmatprep.subr.mxu0 0.0
    %1357 = vmatpush1.msra.mxu0 0.0
    %1358 = vmatprep.subr.mxu0 0.0
    %1359 = vmatpush1.msra.mxu0 0.0
    %1360 = vmatprep.subr.mxu0 0.0
    %1361 = vmatpush1.msra.mxu0 0.0
    %1362 = vmatprep.subr.mxu0 0.0
    %1363 = vmatpush1.msra.mxu0 0.0
    %1364 = vmatprep.subr.mxu0 0.0
    %1365 = vmatpush1.msra.mxu0 0.0
    %1366 = vmatprep.subr.mxu0 0.0
    %1367 = vmatpush1.msra.mxu0 0.0
    %1368 = vmatprep.subr.mxu0 0.0
    %1369 = vmatpush1.msra.mxu0 0.0
    %1370 = vmatprep.subr.mxu0 0.0
    %1371 = vmatpush1.msra.mxu0 0.0
    %1372 = vmatprep.subr.mxu0 0.0
    %1373 = vmatpush1.msra.mxu0 0.0
    %1374 = vmatprep.subr.mxu0 0.0
    %1375 = vmatpush1.msra.mxu0 0.0
    %1376 = vmatprep.subr.mxu0 0.0
    %1377 = vmatpush1.msra.mxu0 0.0
    %1378 = vmatprep.subr.mxu0 0.0
    %1379 = vmatpush1.msra.mxu0 0.0
    %1380 = vmatprep.subr.mxu0 0.0
    %1381 = vmatpush1.msra.mxu0 0.0
    %1382 = vmatprep.subr.mxu0 0.0
    %1383 = vmatpush1.msra.mxu0 0.0
    %1384 = vmatprep.mubr.f32.mxu0 0.0
    %1385 = vmatmul.mubr.f32.gmra.mrb[0].mxu0 %v1248
    %v1386 = vpop.f32.mrb[0].mxu0
    %v1387 = vadd.f32 %v435, %v1386
    %v1388 = vpop.f32.mrb[0].mxu0
    %1389 = vdwg.mxu0
    %v1390 = vadd.f32 %v302, %v1316
    %v1391 = vxor.u32 %v1390, 2147483648
    %v1392 = vmul.f32 %v1391, 1.442695
    %v1393 = vpow.pop %v1392
    %v1394 = vadd.f32 %v1393, 1.0
    %v1395 = vrcp.pop %v1394
    %v1396 = vmul.f32 1.0, %v1395
    %v1397 = vadd.f32 %v304, %v1318
    %v1398 = vxor.u32 %v1397, 2147483648
    %v1399 = vmul.f32 %v1398, 1.442695
    %v1400 = vpow.pop %v1399
    %v1401 = vadd.f32 %v1400, 1.0
    %v1402 = vrcp.pop %v1401
    %v1403 = vmul.f32 1.0, %v1402
    %v1404 = vmul.f32 %v1396, %v1387
    %v1405 = vadd.f32 %v410, %v1404
    %v1406 = vtanh.pop %v1405
    %v1407 = vsub.f32 1.0, %v1403
    %v1408 = vmul.f32 %v1407, %v1406
    %v1409 = vmul.f32 %v1403, %v1248
    %v1410 = vadd.f32 %v1408, %v1409
    %1411 = vmatprep.subr.mxu0 %v83
    %1412 = vmatpush1.msra.mxu0 %v82
    %1413 = vmatprep.subr.mxu0 %v86
    %1414 = vmatpush1.msra.mxu0 %v85
    %1415 = vmatprep.subr.mxu0 %v89
    %1416 = vmatpush1.msra.mxu0 %v88
    %1417 = vmatprep.subr.mxu0 %v92
    %1418 = vmatpush1.msra.mxu0 %v91
    %1419 = vmatprep.subr.mxu0 %v95
    %1420 = vmatpush1.msra.mxu0 %v94
    %1421 = vmatprep.subr.mxu0 %v98
    %1422 = vmatpush1.msra.mxu0 %v97
    %1423 = vmatprep.subr.mxu0 %v101
    %1424 = vmatpush1.msra.mxu0 %v100
    %1425 = vmatprep.subr.mxu0 %v104
    %1426 = vmatpush1.msra.mxu0 %v103
    %1427 = vmatprep.subr.mxu0 %v107
    %1428 = vmatpush1.msra.mxu0 %v106
    %1429 = vmatprep.subr.mxu0 %v110
    %1430 = vmatpush1.msra.mxu0 %v109
    %1431 = vmatprep.subr.mxu0 %v113
    %1432 = vmatpush1.msra.mxu0 %v112
    %1433 = vmatprep.subr.mxu0 %v116
    %1434 = vmatpush1.msra.mxu0 %v115
    %1435 = vmatprep.subr.mxu0 %v119
    %1436 = vmatpush1.msra.mxu0 %v118
    %1437 = vmatprep.subr.mxu0 %v122
    %1438 = vmatpush1.msra.mxu0 %v121
    %1439 = vmatprep.subr.mxu0 %v125
    %1440 = vmatpush1.msra.mxu0 %v124
    %1441 = vmatprep.subr.mxu0 %v128
    %1442 = vmatpush1.msra.mxu0 %v127
    %1443 = vmatprep.subr.mxu0 0.0
    %1444 = vmatpush1.msra.mxu0 0.0
    %1445 = vmatprep.subr.mxu0 0.0
    %1446 = vmatpush1.msra.mxu0 0.0
    %1447 = vmatprep.subr.mxu0 0.0
    %1448 = vmatpush1.msra.mxu0 0.0
    %1449 = vmatprep.subr.mxu0 0.0
    %1450 = vmatpush1.msra.mxu0 0.0
    %1451 = vmatprep.subr.mxu0 0.0
    %1452 = vmatpush1.msra.mxu0 0.0
    %1453 = vmatprep.subr.mxu0 0.0
    %1454 = vmatpush1.msra.mxu0 0.0
    %1455 = vmatprep.subr.mxu0 0.0
    %1456 = vmatpush1.msra.mxu0 0.0
    %1457 = vmatprep.subr.mxu0 0.0
    %1458 = vmatpush1.msra.mxu0 0.0
    %1459 = vmatprep.subr.mxu0 0.0
    %1460 = vmatpush1.msra.mxu0 0.0
    %1461 = vmatprep.subr.mxu0 0.0
    %1462 = vmatpush1.msra.mxu0 0.0
    %1463 = vmatprep.subr.mxu0 0.0
    %1464 = vmatpush1.msra.mxu0 0.0
    %1465 = vmatprep.subr.mxu0 0.0
    %1466 = vmatpush1.msra.mxu0 0.0
    %1467 = vmatprep.subr.mxu0 0.0
    %1468 = vmatpush1.msra.mxu0 0.0
    %1469 = vmatprep.subr.mxu0 0.0
    %1470 = vmatpush1.msra.mxu0 0.0
    %1471 = vmatprep.subr.mxu0 0.0
    %1472 = vmatpush1.msra.mxu0 0.0
    %1473 = vmatprep.subr.mxu0 0.0
    %1474 = vmatpush1.msra.mxu0 0.0
    %1475 = vmatprep.mubr.f32.mxu0 0.0
    %1476 = vmatmul.mubr.f32.gmra.mrb[0].mxu0 %v1410
    %v1477 = vpop.f32.mrb[0].mxu0
    %v1478 = vadd.f32 %v427, %v1477
    %v1479 = vpop.f32.mrb[0].mxu0
    %v1480 = vadd.f32 %v431, %v1479
    %1481 = vdwg.mxu0
    %1482 = vmatprep.subr.mxu0 0.0
    %1483 = vmatpush1.msra.mxu0 %v84
    %1484 = vmatprep.subr.mxu0 0.0
    %1485 = vmatpush1.msra.mxu0 %v87
    %1486 = vmatprep.subr.mxu0 0.0
    %1487 = vmatpush1.msra.mxu0 %v90
    %1488 = vmatprep.subr.mxu0 0.0
    %1489 = vmatpush1.msra.mxu0 %v93
    %1490 = vmatprep.subr.mxu0 0.0
    %1491 = vmatpush1.msra.mxu0 %v96
    %1492 = vmatprep.subr.mxu0 0.0
    %1493 = vmatpush1.msra.mxu0 %v99
    %1494 = vmatprep.subr.mxu0 0.0
    %1495 = vmatpush1.msra.mxu0 %v102
    %1496 = vmatprep.subr.mxu0 0.0
    %1497 = vmatpush1.msra.mxu0 %v105
    %1498 = vmatprep.subr.mxu0 0.0
    %1499 = vmatpush1.msra.mxu0 %v108
    %1500 = vmatprep.subr.mxu0 0.0
    %1501 = vmatpush1.msra.mxu0 %v111
    %1502 = vmatprep.subr.mxu0 0.0
    %1503 = vmatpush1.msra.mxu0 %v114
    %1504 = vmatprep.subr.mxu0 0.0
    %1505 = vmatpush1.msra.mxu0 %v117
    %1506 = vmatprep.subr.mxu0 0.0
    %1507 = vmatpush1.msra.mxu0 %v120
    %1508 = vmatprep.subr.mxu0 0.0
    %1509 = vmatpush1.msra.mxu0 %v123
    %1510 = vmatprep.subr.mxu0 0.0
    %1511 = vmatpush1.msra.mxu0 %v126
    %1512 = vmatprep.subr.mxu0 0.0
    %1513 = vmatpush1.msra.mxu0 %v129
    %1514 = vmatprep.subr.mxu0 0.0
    %1515 = vmatpush1.msra.mxu0 0.0
    %1516 = vmatprep.subr.mxu0 0.0
    %1517 = vmatpush1.msra.mxu0 0.0
    %1518 = vmatprep.subr.mxu0 0.0
    %1519 = vmatpush1.msra.mxu0 0.0
    %1520 = vmatprep.subr.mxu0 0.0
    %1521 = vmatpush1.msra.mxu0 0.0
    %1522 = vmatprep.subr.mxu0 0.0
    %1523 = vmatpush1.msra.mxu0 0.0
    %1524 = vmatprep.subr.mxu0 0.0
    %1525 = vmatpush1.msra.mxu0 0.0
    %1526 = vmatprep.subr.mxu0 0.0
    %1527 = vmatpush1.msra.mxu0 0.0
    %1528 = vmatprep.subr.mxu0 0.0
    %1529 = vmatpush1.msra.mxu0 0.0
    %1530 = vmatprep.subr.mxu0 0.0
    %1531 = vmatpush1.msra.mxu0 0.0
    %1532 = vmatprep.subr.mxu0 0.0
    %1533 = vmatpush1.msra.mxu0 0.0
    %1534 = vmatprep.subr.mxu0 0.0
    %1535 = vmatpush1.msra.mxu0 0.0
    %1536 = vmatprep.subr.mxu0 0.0
    %1537 = vmatpush1.msra.mxu0 0.0
    %1538 = vmatprep.subr.mxu0 0.0
    %1539 = vmatpush1.msra.mxu0 0.0
    %1540 = vmatprep.subr.mxu0 0.0
    %1541 = vmatpush1.msra.mxu0 0.0
    %1542 = vmatprep.subr.mxu0 0.0
    %1543 = vmatpush1.msra.mxu0 0.0
    %1544 = vmatprep.subr.mxu0 0.0
    %1545 = vmatpush1.msra.mxu0 0.0
    %1546 = vmatprep.mubr.f32.mxu0 0.0
    %1547 = vmatmul.mubr.f32.gmra.mrb[0].mxu0 %v1410
    %v1548 = vpop.f32.mrb[0].mxu0
    %v1549 = vadd.f32 %v435, %v1548
    %v1550 = vpop.f32.mrb[0].mxu0
    %1551 = vdwg.mxu0
    %v1552 = vadd.f32 %v308, %v1478
    %v1553 = vxor.u32 %v1552, 2147483648
    %v1554 = vmul.f32 %v1553, 1.442695
    %v1555 = vpow.pop %v1554
    %v1556 = vadd.f32 %v1555, 1.0
    %v1557 = vrcp.pop %v1556
    %v1558 = vmul.f32 1.0, %v1557
    %v1559 = vadd.f32 %v310, %v1480
    %v1560 = vxor.u32 %v1559, 2147483648
    %v1561 = vmul.f32 %v1560, 1.442695
    %v1562 = vpow.pop %v1561
    %v1563 = vadd.f32 %v1562, 1.0
    %v1564 = vrcp.pop %v1563
    %v1565 = vmul.f32 1.0, %v1564
    %v1566 = vmul.f32 %v1558, %v1549
    %v1567 = vadd.f32 %v415, %v1566
    %v1568 = vtanh.pop %v1567
    %v1569 = vsub.f32 1.0, %v1565
    %v1570 = vmul.f32 %v1569, %v1568
    %v1571 = vmul.f32 %v1565, %v1410
    %v1572 = vadd.f32 %v1570, %v1571
    %1573 = vmatprep.subr.mxu0 %v83
    %1574 = vmatpush1.msra.mxu0 %v82
    %1575 = vmatprep.subr.mxu0 %v86
    %1576 = vmatpush1.msra.mxu0 %v85
    %1577 = vmatprep.subr.mxu0 %v89
    %1578 = vmatpush1.msra.mxu0 %v88
    %1579 = vmatprep.subr.mxu0 %v92
    %1580 = vmatpush1.msra.mxu0 %v91
    %1581 = vmatprep.subr.mxu0 %v95
    %1582 = vmatpush1.msra.mxu0 %v94
    %1583 = vmatprep.subr.mxu0 %v98
    %1584 = vmatpush1.msra.mxu0 %v97
    %1585 = vmatprep.subr.mxu0 %v101
    %1586 = vmatpush1.msra.mxu0 %v100
    %1587 = vmatprep.subr.mxu0 %v104
    %1588 = vmatpush1.msra.mxu0 %v103
    %1589 = vmatprep.subr.mxu0 %v107
    %1590 = vmatpush1.msra.mxu0 %v106
    %1591 = vmatprep.subr.mxu0 %v110
    %1592 = vmatpush1.msra.mxu0 %v109
    %1593 = vmatprep.subr.mxu0 %v113
    %1594 = vmatpush1.msra.mxu0 %v112
    %1595 = vmatprep.subr.mxu0 %v116
    %1596 = vmatpush1.msra.mxu0 %v115
    %1597 = vmatprep.subr.mxu0 %v119
    %1598 = vmatpush1.msra.mxu0 %v118
    %1599 = vmatprep.subr.mxu0 %v122
    %1600 = vmatpush1.msra.mxu0 %v121
    %1601 = vmatprep.subr.mxu0 %v125
    %1602 = vmatpush1.msra.mxu0 %v124
    %1603 = vmatprep.subr.mxu0 %v128
    %1604 = vmatpush1.msra.mxu0 %v127
    %1605 = vmatprep.subr.mxu0 0.0
    %1606 = vmatpush1.msra.mxu0 0.0
    %1607 = vmatprep.subr.mxu0 0.0
    %1608 = vmatpush1.msra.mxu0 0.0
    %1609 = vmatprep.subr.mxu0 0.0
    %1610 = vmatpush1.msra.mxu0 0.0
    %1611 = vmatprep.subr.mxu0 0.0
    %1612 = vmatpush1.msra.mxu0 0.0
    %1613 = vmatprep.subr.mxu0 0.0
    %1614 = vmatpush1.msra.mxu0 0.0
    %1615 = vmatprep.subr.mxu0 0.0
    %1616 = vmatpush1.msra.mxu0 0.0
    %1617 = vmatprep.subr.mxu0 0.0
    %1618 = vmatpush1.msra.mxu0 0.0
    %1619 = vmatprep.subr.mxu0 0.0
    %1620 = vmatpush1.msra.mxu0 0.0
    %1621 = vmatprep.subr.mxu0 0.0
    %1622 = vmatpush1.msra.mxu0 0.0
    %1623 = vmatprep.subr.mxu0 0.0
    %1624 = vmatpush1.msra.mxu0 0.0
    %1625 = vmatprep.subr.mxu0 0.0
    %1626 = vmatpush1.msra.mxu0 0.0
    %1627 = vmatprep.subr.mxu0 0.0
    %1628 = vmatpush1.msra.mxu0 0.0
    %1629 = vmatprep.subr.mxu0 0.0
    %1630 = vmatpush1.msra.mxu0 0.0
    %1631 = vmatprep.subr.mxu0 0.0
    %1632 = vmatpush1.msra.mxu0 0.0
    %1633 = vmatprep.subr.mxu0 0.0
    %1634 = vmatpush1.msra.mxu0 0.0
    %1635 = vmatprep.subr.mxu0 0.0
    %1636 = vmatpush1.msra.mxu0 0.0
    %1637 = vmatprep.mubr.f32.mxu0 0.0
    %1638 = vmatmul.mubr.f32.gmra.mrb[0].mxu0 %v1572
    %v1639 = vpop.f32.mrb[0].mxu0
    %v1640 = vadd.f32 %v427, %v1639
    %v1641 = vpop.f32.mrb[0].mxu0
    %v1642 = vadd.f32 %v431, %v1641
    %1643 = vdwg.mxu0
    %1644 = vmatprep.subr.mxu0 0.0
    %1645 = vmatpush1.msra.mxu0 %v84
    %1646 = vmatprep.subr.mxu0 0.0
    %1647 = vmatpush1.msra.mxu0 %v87
    %1648 = vmatprep.subr.mxu0 0.0
    %1649 = vmatpush1.msra.mxu0 %v90
    %1650 = vmatprep.subr.mxu0 0.0
    %1651 = vmatpush1.msra.mxu0 %v93
    %1652 = vmatprep.subr.mxu0 0.0
    %1653 = vmatpush1.msra.mxu0 %v96
    %1654 = vmatprep.subr.mxu0 0.0
    %1655 = vmatpush1.msra.mxu0 %v99
    %1656 = vmatprep.subr.mxu0 0.0
    %1657 = vmatpush1.msra.mxu0 %v102
    %1658 = vmatprep.subr.mxu0 0.0
    %1659 = vmatpush1.msra.mxu0 %v105
    %1660 = vmatprep.subr.mxu0 0.0
    %1661 = vmatpush1.msra.mxu0 %v108
    %1662 = vmatprep.subr.mxu0 0.0
    %1663 = vmatpush1.msra.mxu0 %v111
    %1664 = vmatprep.subr.mxu0 0.0
    %1665 = vmatpush1.msra.mxu0 %v114
    %1666 = vmatprep.subr.mxu0 0.0
    %1667 = vmatpush1.msra.mxu0 %v117
    %1668 = vmatprep.subr.mxu0 0.0
    %1669 = vmatpush1.msra.mxu0 %v120
    %1670 = vmatprep.subr.mxu0 0.0
    %1671 = vmatpush1.msra.mxu0 %v123
    %1672 = vmatprep.subr.mxu0 0.0
    %1673 = vmatpush1.msra.mxu0 %v126
    %1674 = vmatprep.subr.mxu0 0.0
    %1675 = vmatpush1.msra.mxu0 %v129
    %1676 = vmatprep.subr.mxu0 0.0
    %1677 = vmatpush1.msra.mxu0 0.0
    %1678 = vmatprep.subr.mxu0 0.0
    %1679 = vmatpush1.msra.mxu0 0.0
    %1680 = vmatprep.subr.mxu0 0.0
    %1681 = vmatpush1.msra.mxu0 0.0
    %1682 = vmatprep.subr.mxu0 0.0
    %1683 = vmatpush1.msra.mxu0 0.0
    %1684 = vmatprep.subr.mxu0 0.0
    %1685 = vmatpush1.msra.mxu0 0.0
    %1686 = vmatprep.subr.mxu0 0.0
    %1687 = vmatpush1.msra.mxu0 0.0
    %1688 = vmatprep.subr.mxu0 0.0
    %1689 = vmatpush1.msra.mxu0 0.0
    %1690 = vmatprep.subr.mxu0 0.0
    %1691 = vmatpush1.msra.mxu0 0.0
    %1692 = vmatprep.subr.mxu0 0.0
    %1693 = vmatpush1.msra.mxu0 0.0
    %1694 = vmatprep.subr.mxu0 0.0
    %1695 = vmatpush1.msra.mxu0 0.0
    %1696 = vmatprep.subr.mxu0 0.0
    %1697 = vmatpush1.msra.mxu0 0.0
    %1698 = vmatprep.subr.mxu0 0.0
    %1699 = vmatpush1.msra.mxu0 0.0
    %1700 = vmatprep.subr.mxu0 0.0
    %1701 = vmatpush1.msra.mxu0 0.0
    %1702 = vmatprep.subr.mxu0 0.0
    %1703 = vmatpush1.msra.mxu0 0.0
    %1704 = vmatprep.subr.mxu0 0.0
    %1705 = vmatpush1.msra.mxu0 0.0
    %1706 = vmatprep.subr.mxu0 0.0
    %1707 = vmatpush1.msra.mxu0 0.0
    %1708 = vmatprep.mubr.f32.mxu0 0.0
    %1709 = vmatmul.mubr.f32.gmra.mrb[0].mxu0 %v1572
    %v1710 = vpop.f32.mrb[0].mxu0
    %v1711 = vadd.f32 %v435, %v1710
    %v1712 = vpop.f32.mrb[0].mxu0
    %1713 = vdwg.mxu0
    %v1714 = vadd.f32 %v314, %v1640
    %v1715 = vxor.u32 %v1714, 2147483648
    %v1716 = vmul.f32 %v1715, 1.442695
    %v1717 = vpow.pop %v1716
    %v1718 = vadd.f32 %v1717, 1.0
    %v1719 = vrcp.pop %v1718
    %v1720 = vmul.f32 1.0, %v1719
    %v1721 = vadd.f32 %v316, %v1642
    %v1722 = vxor.u32 %v1721, 2147483648
    %v1723 = vmul.f32 %v1722, 1.442695
    %v1724 = vpow.pop %v1723
    %v1725 = vadd.f32 %v1724, 1.0
    %v1726 = vrcp.pop %v1725
    %v1727 = vmul.f32 1.0, %v1726
    %v1728 = vmul.f32 %v1720, %v1711
    %v1729 = vadd.f32 %v420, %v1728
    %v1730 = vtanh.pop %v1729
    %v1731 = vsub.f32 1.0, %v1727
    %v1732 = vmul.f32 %v1731, %v1730
    %v1733 = vmul.f32 %v1727, %v1572
    %v1734 = vadd.f32 %v1732, %v1733
    %v1735 = vld [vmem:[#allocation8] sm:$0xff]
    %v1736 = vld [vmem:[#allocation8 + $0x8] sm:$0xff]
    %v1737 = vld [vmem:[#allocation8 + $0x10] sm:$0xff]
    %v1738 = vld [vmem:[#allocation8 + $0x18] sm:$0xff]
    %v1739 = vld [vmem:[#allocation8 + $0x20] sm:$0xff]
    %v1740 = vld [vmem:[#allocation8 + $0x28] sm:$0xff]
    %v1741 = vld [vmem:[#allocation8 + $0x30] sm:$0xff]
    %v1742 = vld [vmem:[#allocation8 + $0x38] sm:$0xff]
    %v1743 = vld [vmem:[#allocation8 + $0x40] sm:$0xff]
    %v1744 = vld [vmem:[#allocation8 + $0x48] sm:$0xff]
    %v1745 = vld [vmem:[#allocation8 + $0x50] sm:$0xff]
    %v1746 = vld [vmem:[#allocation8 + $0x58] sm:$0xff]
    %v1747 = vld [vmem:[#allocation8 + $0x60] sm:$0xff]
    %v1748 = vld [vmem:[#allocation8 + $0x68] sm:$0xff]
    %v1749 = vld [vmem:[#allocation8 + $0x70] sm:$0xff]
    %v1750 = vld [vmem:[#allocation8 + $0x78] sm:$0xff]
    %v1751 = vld [vmem:[%s6] sm:$0x1]
    %v1753 = vlaneseq
    %v1754 = vshrl.u32 %v1753, 7
    %v1755 = vsub.s32 0, %v1754
    %v1756 = vrot.slane %v1751, %v1755
    %1758 = vmatprep.subr.mxu0 0.0
    %1759 = vmatpush1.msra.mxu0 %v1735
    %1760 = vmatprep.subr.mxu0 0.0
    %1761 = vmatpush1.msra.mxu0 %v1736
    %1762 = vmatprep.subr.mxu0 0.0
    %1763 = vmatpush1.msra.mxu0 %v1737
    %1764 = vmatprep.subr.mxu0 0.0
    %1765 = vmatpush1.msra.mxu0 %v1738
    %1766 = vmatprep.subr.mxu0 0.0
    %1767 = vmatpush1.msra.mxu0 %v1739
    %1768 = vmatprep.subr.mxu0 0.0
    %1769 = vmatpush1.msra.mxu0 %v1740
    %1770 = vmatprep.subr.mxu0 0.0
    %1771 = vmatpush1.msra.mxu0 %v1741
    %1772 = vmatprep.subr.mxu0 0.0
    %1773 = vmatpush1.msra.mxu0 %v1742
    %1774 = vmatprep.subr.mxu0 0.0
    %1775 = vmatpush1.msra.mxu0 %v1743
    %1776 = vmatprep.subr.mxu0 0.0
    %1777 = vmatpush1.msra.mxu0 %v1744
    %1778 = vmatprep.subr.mxu0 0.0
    %1779 = vmatpush1.msra.mxu0 %v1745
    %1780 = vmatprep.subr.mxu0 0.0
    %1781 = vmatpush1.msra.mxu0 %v1746
    %1782 = vmatprep.subr.mxu0 0.0
    %1783 = vmatpush1.msra.mxu0 %v1747
    %1784 = vmatprep.subr.mxu0 0.0
    %1785 = vmatpush1.msra.mxu0 %v1748
    %1786 = vmatprep.subr.mxu0 0.0
    %1787 = vmatpush1.msra.mxu0 %v1749
    %1788 = vmatprep.subr.mxu0 0.0
    %1789 = vmatpush1.msra.mxu0 %v1750
    %1790 = vmatprep.subr.mxu0 0.0
    %1791 = vmatpush1.msra.mxu0 0.0
    %1792 = vmatprep.subr.mxu0 0.0
    %1793 = vmatpush1.msra.mxu0 0.0
    %1794 = vmatprep.subr.mxu0 0.0
    %1795 = vmatpush1.msra.mxu0 0.0
    %1796 = vmatprep.subr.mxu0 0.0
    %1797 = vmatpush1.msra.mxu0 0.0
    %1798 = vmatprep.subr.mxu0 0.0
    %1799 = vmatpush1.msra.mxu0 0.0
    %1800 = vmatprep.subr.mxu0 0.0
    %1801 = vmatpush1.msra.mxu0 0.0
    %1802 = vmatprep.subr.mxu0 0.0
    %1803 = vmatpush1.msra.mxu0 0.0
    %1804 = vmatprep.subr.mxu0 0.0
    %1805 = vmatpush1.msra.mxu0 0.0
    %1806 = vmatprep.subr.mxu0 0.0
    %1807 = vmatpush1.msra.mxu0 0.0
    %1808 = vmatprep.subr.mxu0 0.0
    %1809 = vmatpush1.msra.mxu0 0.0
    %1810 = vmatprep.subr.mxu0 0.0
    %1811 = vmatpush1.msra.mxu0 0.0
    %1812 = vmatprep.subr.mxu0 0.0
    %1813 = vmatpush1.msra.mxu0 0.0
    %1814 = vmatprep.subr.mxu0 0.0
    %1815 = vmatpush1.msra.mxu0 0.0
    %1816 = vmatprep.subr.mxu0 0.0
    %1817 = vmatpush1.msra.mxu0 0.0
    %1818 = vmatprep.subr.mxu0 0.0
    %1819 = vmatpush1.msra.mxu0 0.0
    %1820 = vmatprep.subr.mxu0 0.0
    %1821 = vmatpush1.msra.mxu0 0.0
    %1822 = vmatprep.mubr.f32.mxu0 0.0
    %1823 = vmatmul.mubr.f32.gmra.mrb[0].mxu0 %v1734
    %v1824 = vpop.f32.mrb[0].mxu0
    %v1825 = vadd.f32 %v1756, %v1824
    %v1826 = vpop.f32.mrb[0].mxu0
    %1827 = vdwg.mxu0
    %1828 = vst [vmem:[#allocation10] sm:$0xff] %v1825
    // Predicated region
    $region46: #{tpu_custom_call.1} parent=1 // pred_check
      _
    $region47: #{tpu_custom_call.1} parent=1 // pred_check_branch
      %1830 = sbr.rel (0) target = $region49
    $region48: #{tpu_custom_call.1} parent=1 // pred_region
      %s1832 = ssub.s32 128, 128
      %1833 = vsyncadd [#allocation4], %s1832
      %s1835 = sshll.u32 [#allocation10], 4
      %s1836 = int_to_ptr.vmem [resolvable:$true] %s1835
      %1838 = dma.vmem_to_hbm [thread:$0]  %s1836, 128, %s7, [#allocation4]
    $region49: #{tpu_custom_call.1} parent=1 // pred_fallthru
      _
    // Predicated region
    $region50: #{tpu_custom_call.1} parent=1 // pred_check
      _
    $region51: #{tpu_custom_call.1} parent=1 // pred_check_branch
      %1840 = sbr.rel (0) target = $region53
    $region52: #{tpu_custom_call.1} parent=1 // pred_region
      %1841 = dma.done [#allocation4], 128
    $region53: #{tpu_custom_call.1} parent=1 // pred_fallthru
      _
    %1842 = vsyncpa [#allocation3], 1
    %1843 = vsyncpa [#allocation6], 1
    %1844 = vsyncpa [#allocation9], 1
    %1845 = vsyncpa [#allocation4], 1

</llo_original>
